<compile_context>
chip_gen: v7x
topology: tpu7x:2x2x1
jax: 0.10.0
libtpu: 0.0.40
codegen_flags: <defaults>
</compile_context>

<pallas_src>
import functools

import jax
import jax.numpy as jnp
from jax import lax
from jax.experimental import pallas as pl
from jax.experimental.pallas import tpu as pltpu

_BN_EPS = 1e-5


# ------------------------------ Pallas kernel -------------------------------

def _mish(y):
    # mish(x) = x * tanh(softplus(x)); stable softplus.  mish(0) == 0, so the
    # zero padding ring of the flattened activation is preserved.
    sp = jnp.maximum(y, 0.0) + jnp.log1p(jnp.exp(-jnp.abs(y)))
    return y * jnp.tanh(sp)


def _im2col_conv3x3(ext_ref, pat_ref, ci, wf, b, Wp, L, mask=None):
    """3x3 zero-padded ('same') conv on a flattened padded activation.

    The (ci, L) activation lives in ext_ref[0:ci, Wp+1 : Wp+1+L] with zero
    guard lanes on both sides, so the 9 flat lane-shifted slices below are
    exactly the conv taps for every interior pixel.  One MXU matmul with
    K = 9*ci; the (co, L) result is lane-dense.
    """
    for ky in range(3):
        for kx in range(3):
            t = ky * 3 + kx
            pat_ref[t * ci:(t + 1) * ci, :] = (
                ext_ref[0:ci, ky * Wp + kx: ky * Wp + kx + L])
    y = jnp.dot(wf, pat_ref[0:9 * ci, :],
                preferred_element_type=jnp.float32) + b          # (co, L)
    if mask is not None:
        # Re-zero the padding ring / lane tail (and remove the bias there) so
        # the result can feed the next zero-padded conv directly.
        y = y * mask
    return y


def _up_fused_kernel(x1_ref, x2p_ref, up_ref, w1_ref, b1_ref, w2_ref, b2_ref,
                     w3_ref, b3_ref, mask_ref, out_ref, ext_ref, pat_ref,
                     *, C1, C2, Cmid, Wp, Lpad):
    off = Wp + 1
    mask = mask_ref[...]                                         # (1, Lpad)

    # Zero the im2col source buffer; only [off, off+Lpad) is ever rewritten,
    # so the guard lanes stay zero for both convolutions.  Done every grid
    # step (cheap ~KBs) so correctness holds even when the batch axis is
    # split across TensorCores and a core never sees program_id == 0.
    ext_ref[...] = jnp.zeros_like(ext_ref)

    # Bilinear upsample (align_corners=True) + F.pad(diff) + conv zero-pad of
    # x1, folded into one precomputed matrix -> a single MXU matmul.
    x1u = jnp.dot(x1_ref[0], up_ref[...],
                  preferred_element_type=jnp.float32)            # (C1, Lpad)

    # torch.cat([x2, x1], dim=1): place both channel groups in the buffer.
    ext_ref[0:C2, off:off + Lpad] = x2p_ref[0]
    ext_ref[C2:C2 + C1, off:off + Lpad] = x1u

    # DoubleConv: conv3x3 + (folded eval-mode) BatchNorm + Mish, twice.
    h = _mish(_im2col_conv3x3(ext_ref, pat_ref, C1 + C2,
                              w1_ref[...], b1_ref[...], Wp, Lpad, mask=mask))
    ext_ref[0:Cmid, off:off + Lpad] = h
    # No mask needed after the second conv: its output only feeds the 1x1
    # conv_out (no spatial mixing) and ring/tail lanes are cropped on host.
    h = _mish(_im2col_conv3x3(ext_ref, pat_ref, Cmid,
                              w2_ref[...], b2_ref[...], Wp, Lpad))

    # conv_out: 1x1 convolution.
    y = jnp.dot(w3_ref[...], h, preferred_element_type=jnp.float32) + b3_ref[...]
    out_ref[...] = y[None].astype(out_ref.dtype)


# ------------------------------ host-side prep ------------------------------

def _upsample_matrix(n_in, n_out):
    """(n_out, n_in) bilinear interpolation matrix, align_corners=True."""
    if n_in == 1:
        return jnp.ones((n_out, 1), jnp.float32)
    i = jnp.arange(n_out, dtype=jnp.float32)
    if n_out > 1:
        src = i * (float(n_in - 1) / float(n_out - 1))
    else:
        src = jnp.zeros_like(i)
    i0 = jnp.clip(jnp.floor(src).astype(jnp.int32), 0, n_in - 1)
    i1 = jnp.clip(i0 + 1, 0, n_in - 1)
    frac = src - i0.astype(jnp.float32)
    rows = jnp.arange(n_out)
    a = jnp.zeros((n_out, n_in), jnp.float32)
    a = a.at[rows, i0].add(1.0 - frac)
    a = a.at[rows, i1].add(frac)
    return a


def _fold_conv_bn(w, b, g, be, m, v):
    """Fold eval-mode BatchNorm into a 3x3 conv.  Returns (Co, 9*Ci), (Co, 1)."""
    co, ci = w.shape[0], w.shape[1]
    scale = g / jnp.sqrt(v + _BN_EPS)
    wf = jnp.transpose(w, (0, 2, 3, 1)).reshape(co, 9 * ci) * scale[:, None]
    bf = (b - m) * scale + be
    return wf, bf.reshape(co, 1)


def _prepare_operands(params, H1, W1, H2, W2, Lpad):
    (w1, b1, g1, be1, m1, v1), (w2, b2, g2, be2, m2, v2), (w3, b3) = params
    w1f, b1f = _fold_conv_bn(w1, b1, g1, be1, m1, v1)
    w2f, b2f = _fold_conv_bn(w2, b2, g2, be2, m2, v2)
    w3f = w3.reshape(w3.shape[0], w3.shape[1])          # 1x1 conv -> (Cout, Cmid)
    b3f = b3.reshape(-1, 1)

    Hp, Wp = H2 + 2, W2 + 2
    Lp = Hp * Wp
    H1u, W1u = 2 * H1, 2 * W1
    dY, dX = H2 - H1u, W2 - W1u
    if dY < 0 or dX < 0:
        # TODO(synk): negative F.pad (cropping the upsampled map) not supported.
        raise NotImplementedError("x2 must be at least as large as upsampled x1")
    ah = jnp.zeros((Hp, H1), jnp.float32).at[
        1 + dY // 2: 1 + dY // 2 + H1u, :].set(_upsample_matrix(H1, H1u))
    aw = jnp.zeros((Wp, W1), jnp.float32).at[
        1 + dX // 2: 1 + dX // 2 + W1u, :].set(_upsample_matrix(W1, W1u))
    up_mat = jnp.kron(ah, aw).T                         # (H1*W1, Hp*Wp)
    up_mat = jnp.pad(up_mat, ((0, 0), (0, Lpad - Lp)))  # zero lane tail

    row = jnp.arange(Hp)[:, None]
    col = jnp.arange(Wp)[None, :]
    interior = (row >= 1) & (row <= H2) & (col >= 1) & (col <= W2)
    mask = interior.astype(jnp.float32).reshape(1, Lp)
    mask = jnp.pad(mask, ((0, 0), (0, Lpad - Lp)))
    return w1f, b1f, w2f, b2f, w3f, b3f, up_mat, mask


def up_forward(x1, x2, params):
    """Pallas implementation of Up.forward (bilinear branch).  NCHW in/out."""
    B, C1, H1, W1 = x1.shape
    Bx, C2, H2, W2 = x2.shape
    assert B == Bx
    Hp, Wp = H2 + 2, W2 + 2
    Lp = Hp * Wp
    Lpad = ((Lp + 127) // 128) * 128                    # lane-dense stores

    w1f, b1f, w2f, b2f, w3f, b3f, up_mat, mask = _prepare_operands(
        params, H1, W1, H2, W2, Lpad)
    Cin = C1 + C2
    Cmid = w1f.shape[0]
    Cout = w3f.shape[0]
    Cext = max(Cin, Cmid)

    x1f = x1.astype(jnp.float32).reshape(B, C1, H1 * W1)
    x2p = jnp.pad(x2.astype(jnp.float32),
                  ((0, 0), (0, 0), (1, 1), (1, 1))).reshape(B, C2, Lp)
    x2p = jnp.pad(x2p, ((0, 0), (0, 0), (0, Lpad - Lp)))

    kernel = functools.partial(_up_fused_kernel, C1=C1, C2=C2, Cmid=Cmid,
                               Wp=Wp, Lpad=Lpad)
    out = pl.pallas_call(
        kernel,
        out_shape=jax.ShapeDtypeStruct((B, Cout, Lpad), jnp.float32),
        grid_spec=pltpu.PrefetchScalarGridSpec(
            num_scalar_prefetch=0,
            grid=(B,),
            in_specs=[
                pl.BlockSpec((1, C1, H1 * W1), lambda b: (b, 0, 0)),  # x1 flat
                pl.BlockSpec((1, C2, Lpad), lambda b: (b, 0, 0)),     # x2 padded flat
                pl.BlockSpec((H1 * W1, Lpad), lambda b: (0, 0)),      # upsample matrix
                pl.BlockSpec((Cmid, 9 * Cin), lambda b: (0, 0)),      # conv1+BN1 weight
                pl.BlockSpec((Cmid, 1), lambda b: (0, 0)),            # conv1+BN1 bias
                pl.BlockSpec((Cmid, 9 * Cmid), lambda b: (0, 0)),     # conv2+BN2 weight
                pl.BlockSpec((Cmid, 1), lambda b: (0, 0)),            # conv2+BN2 bias
                pl.BlockSpec((Cout, Cmid), lambda b: (0, 0)),         # conv_out weight
                pl.BlockSpec((Cout, 1), lambda b: (0, 0)),            # conv_out bias
                pl.BlockSpec((1, Lpad), lambda b: (0, 0)),            # interior mask
            ],
            out_specs=pl.BlockSpec((1, Cout, Lpad), lambda b: (b, 0, 0)),
            scratch_shapes=[
                pltpu.VMEM((Cext, Lpad + 2 * (Wp + 1)), jnp.float32),  # im2col source
                pltpu.VMEM((9 * Cext, Lpad), jnp.float32),             # im2col patches
            ],
        ),
        compiler_params=pltpu.CompilerParams(
            dimension_semantics=("parallel",)),
    )(x1f, x2p, up_mat, w1f, b1f, w2f, b2f, w3f, b3f, mask)

    return out[:, :, :Lp].reshape(B, Cout, Hp, Wp)[:, :, 1:1 + H2, 1:1 + W2]


# ------------------------- synthetic parameter init -------------------------

def init_params(key, in_ch, out_ch):
    """Up(in_ch, out_ch, bilinear=True): DoubleConv(in_ch, out_ch//2) + 1x1."""
    cmid = out_ch // 2
    ks = jax.random.split(key, 8)

    def conv_init(kw, kb, ci, co, ksz):
        bound = 1.0 / (ci * ksz * ksz) ** 0.5
        w = jax.random.uniform(kw, (co, ci, ksz, ksz), jnp.float32, -bound, bound)
        b = jax.random.uniform(kb, (co,), jnp.float32, -bound, bound)
        return w, b

    def bn_init(k, c):
        k1, k2, k3, k4 = jax.random.split(k, 4)
        g = jax.random.uniform(k1, (c,), jnp.float32, 0.5, 1.5)
        be = jax.random.uniform(k2, (c,), jnp.float32, -0.2, 0.2)
        m = jax.random.normal(k3, (c,), jnp.float32) * 0.1
        v = jax.random.uniform(k4, (c,), jnp.float32, 0.5, 1.5)
        return g, be, m, v

    w1, b1 = conv_init(ks[0], ks[1], in_ch, cmid, 3)
    g1, be1, m1, v1 = bn_init(ks[2], cmid)
    w2, b2 = conv_init(ks[3], ks[4], cmid, cmid, 3)
    g2, be2, m2, v2 = bn_init(ks[5], cmid)
    w3, b3 = conv_init(ks[6], ks[7], cmid, out_ch, 1)
    return ((w1, b1, g1, be1, m1, v1), (w2, b2, g2, be2, m2, v2), (w3, b3))


# --------------------- pure-JAX reference (correctness) ---------------------

def _conv_nchw(x, w, b, padding):
    y = lax.conv_general_dilated(
        x, w, window_strides=(1, 1), padding=padding,
        dimension_numbers=("NCHW", "OIHW", "NCHW"))
    return y + b[None, :, None, None]


def _bn_ref(x, g, be, m, v):
    inv = 1.0 / jnp.sqrt(v + _BN_EPS)
    return ((x - m[None, :, None, None]) * (g * inv)[None, :, None, None]
            + be[None, :, None, None])


def up_ref_forward(x1, x2, params):
    (w1, b1, g1, be1, m1, v1), (w2, b2, g2, be2, m2, v2), (w3, b3) = params
    _, _, H1, W1 = x1.shape
    _, _, H2, W2 = x2.shape
    ah = _upsample_matrix(H1, 2 * H1)
    aw = _upsample_matrix(W1, 2 * W1)
    x1u = jnp.einsum("op,bcpq->bcoq", ah, x1)
    x1u = jnp.einsum("oq,bcpq->bcpo", aw, x1u)
    dY, dX = H2 - x1u.shape[2], W2 - x1u.shape[3]
    x1u = jnp.pad(x1u, ((0, 0), (0, 0),
                        (dY // 2, dY - dY // 2), (dX // 2, dX - dX // 2)))
    h = jnp.concatenate([x2, x1u], axis=1)
    h = _conv_nchw(h, w1, b1, ((1, 1), (1, 1)))
    h = _bn_ref(h, g1, be1, m1, v1)
    h = h * jnp.tanh(jax.nn.softplus(h))
    h = _conv_nchw(h, w2, b2, ((1, 1), (1, 1)))
    h = _bn_ref(h, g2, be2, m2, v2)
    h = h * jnp.tanh(jax.nn.softplus(h))
    return _conv_nchw(h, w3, b3, "VALID")


if __name__ == "__main__":
    B = 2
    in_ch, out_ch = 8, 8                       # Up(8, 8, bilinear=True)
    C1 = C2 = in_ch // 2
    H1 = W1 = 8
    H2 = W2 = 16

    key = jax.random.PRNGKey(0)
    k1, k2, kp = jax.random.split(key, 3)
    x1 = jax.random.normal(k1, (B, C1, H1, W1), jnp.float32)   # decoder feature
    x2 = jax.random.normal(k2, (B, C2, H2, W2), jnp.float32)   # skip connection
    params = init_params(kp, in_ch, out_ch)

    y = jax.block_until_ready(up_forward(x1, x2, params))
    y_ref = jax.block_until_ready(up_ref_forward(x1, x2, params))

    assert y.shape == (B, out_ch, H2, W2), y.shape
    max_err = float(jnp.max(jnp.abs(y - y_ref)))
    assert max_err < 2e-4, f"mismatch vs reference: {max_err}"
    print("KERNEL_OK")
</pallas_src>

<mosaic_0001>
module attributes {stable_mosaic.version = 11 : i64} {
  func.func @_up_fused_kernel(%arg0: i32, %arg1: memref<1x4x64xf32, #tpu.memory_space<vmem>>, %arg2: memref<1x4x384xf32, #tpu.memory_space<vmem>>, %arg3: memref<64x384xf32, #tpu.memory_space<vmem>>, %arg4: memref<4x72xf32, #tpu.memory_space<vmem>>, %arg5: memref<4x1xf32, #tpu.memory_space<vmem>>, %arg6: memref<4x36xf32, #tpu.memory_space<vmem>>, %arg7: memref<4x1xf32, #tpu.memory_space<vmem>>, %arg8: memref<8x4xf32, #tpu.memory_space<vmem>>, %arg9: memref<8x1xf32, #tpu.memory_space<vmem>>, %arg10: memref<1x384xf32, #tpu.memory_space<vmem>>, %arg11: memref<1x8x384xf32, #tpu.memory_space<vmem>>, %arg12: memref<8x422xf32, #tpu.memory_space<vmem>>, %arg13: memref<72x384xf32, #tpu.memory_space<vmem>>) attributes {dimension_semantics = [#tpu.dimension_semantics<parallel>], iteration_bounds = array<i64: 2>, scalar_prefetch = 0 : i64, scratch_operands = 2 : i64, tpu.core_type = #tpu.core_type<tc>, window_params = [{transform_indices = @transform_0, window_bounds = array<i64: 1, 4, 64>}, {transform_indices = @transform_1, window_bounds = array<i64: 1, 4, 384>}, {pipeline_mode = #tpu.pipeline_mode<synchronous>, transform_indices = @transform_2, window_bounds = array<i64: 64, 384>}, {pipeline_mode = #tpu.pipeline_mode<synchronous>, transform_indices = @transform_3, window_bounds = array<i64: 4, 72>}, {pipeline_mode = #tpu.pipeline_mode<synchronous>, transform_indices = @transform_4, window_bounds = array<i64: 4, 1>}, {pipeline_mode = #tpu.pipeline_mode<synchronous>, transform_indices = @transform_5, window_bounds = array<i64: 4, 36>}, {pipeline_mode = #tpu.pipeline_mode<synchronous>, transform_indices = @transform_6, window_bounds = array<i64: 4, 1>}, {pipeline_mode = #tpu.pipeline_mode<synchronous>, transform_indices = @transform_7, window_bounds = array<i64: 8, 4>}, {pipeline_mode = #tpu.pipeline_mode<synchronous>, transform_indices = @transform_8, window_bounds = array<i64: 8, 1>}, {pipeline_mode = #tpu.pipeline_mode<synchronous>, transform_indices = @transform_9, window_bounds = array<i64: 1, 384>}, {transform_indices = @transform_10, window_bounds = array<i64: 1, 8, 384>}]} {
    %c0 = arith.constant 0 : index
    %c0_0 = arith.constant 0 : index
    %0 = vector.load %arg10[%c0, %c0_0] : memref<1x384xf32, #tpu.memory_space<vmem>>, vector<1x384xf32>
    %cst = arith.constant 0.000000e+00 : f32
    %1 = vector.broadcast %cst : f32 to vector<8x422xf32>
    %c0_1 = arith.constant 0 : index
    %c0_2 = arith.constant 0 : index
    %2 = vector.load %arg12[%c0_1, %c0_2] : memref<8x422xf32, #tpu.memory_space<vmem>>, vector<8x422xf32>
    tpu.vector_store %arg12[%c0_1, %c0_2], %1 {strides = array<i32>} : memref<8x422xf32, #tpu.memory_space<vmem>>, vector<8x422xf32>,
    %c0_3 = arith.constant 0 : index
    %c0_4 = arith.constant 0 : index
    %c0_5 = arith.constant 0 : index
    %3 = vector.load %arg1[%c0_3, %c0_4, %c0_5] : memref<1x4x64xf32, #tpu.memory_space<vmem>>, vector<1x4x64xf32>
    %4 = vector.shape_cast %3 : vector<1x4x64xf32> to vector<4x64xf32>
    %c0_6 = arith.constant 0 : index
    %c0_7 = arith.constant 0 : index
    %5 = vector.load %arg3[%c0_6, %c0_7] : memref<64x384xf32, #tpu.memory_space<vmem>>, vector<64x384xf32>
    %cst_8 = arith.constant dense<0.000000e+00> : vector<4x384xf32>
    %6 = tpu.matmul %4, %5, %cst_8 {dimension_numbers = #tpu.dot_dimension_numbers<[1], [0], [0], [1], [0, 0, 1, 1], [], []>} : vector<4x64xf32>, vector<64x384xf32>, vector<4x384xf32> -> vector<4x384xf32>
    %c0_9 = arith.constant 0 : index
    %c0_10 = arith.constant 0 : index
    %c0_11 = arith.constant 0 : index
    %7 = vector.load %arg2[%c0_9, %c0_10, %c0_11] : memref<1x4x384xf32, #tpu.memory_space<vmem>>, vector<1x4x384xf32>
    %8 = vector.shape_cast %7 : vector<1x4x384xf32> to vector<4x384xf32>
    %c0_12 = arith.constant 0 : index
    %c19 = arith.constant 19 : index
    %9 = vector.load %arg12[%c0_12, %c19] : memref<8x422xf32, #tpu.memory_space<vmem>>, vector<4x384xf32>
    tpu.vector_store %arg12[%c0_12, %c19], %8 {strides = array<i32>} : memref<8x422xf32, #tpu.memory_space<vmem>>, vector<4x384xf32>,
    %c4 = arith.constant 4 : index
    %c19_13 = arith.constant 19 : index
    %10 = vector.load %arg12[%c4, %c19_13] : memref<8x422xf32, #tpu.memory_space<vmem>>, vector<4x384xf32>
    tpu.vector_store %arg12[%c4, %c19_13], %6 {strides = array<i32>} : memref<8x422xf32, #tpu.memory_space<vmem>>, vector<4x384xf32>,
    %c0_14 = arith.constant 0 : index
    %c0_15 = arith.constant 0 : index
    %11 = vector.load %arg4[%c0_14, %c0_15] : memref<4x72xf32, #tpu.memory_space<vmem>>, vector<4x72xf32>
    %c0_16 = arith.constant 0 : index
    %c0_17 = arith.constant 0 : index
    %12 = vector.load %arg5[%c0_16, %c0_17] : memref<4x1xf32, #tpu.memory_space<vmem>>, vector<4x1xf32>
    %c0_18 = arith.constant 0 : index
    %c0_19 = arith.constant 0 : index
    %13 = vector.load %arg12[%c0_18, %c0_19] : memref<8x422xf32, #tpu.memory_space<vmem>>, vector<8x384xf32>
    %c0_20 = arith.constant 0 : index
    %c0_21 = arith.constant 0 : index
    %14 = vector.load %arg13[%c0_20, %c0_21] : memref<72x384xf32, #tpu.memory_space<vmem>>, vector<8x384xf32>
    tpu.vector_store %arg13[%c0_20, %c0_21], %13 {strides = array<i32>} : memref<72x384xf32, #tpu.memory_space<vmem>>, vector<8x384xf32>,
    %c0_22 = arith.constant 0 : index
    %c1 = arith.constant 1 : index
    %15 = vector.load %arg12[%c0_22, %c1] : memref<8x422xf32, #tpu.memory_space<vmem>>, vector<8x384xf32>
    %c8 = arith.constant 8 : index
    %c0_23 = arith.constant 0 : index
    %16 = vector.load %arg13[%c8, %c0_23] : memref<72x384xf32, #tpu.memory_space<vmem>>, vector<8x384xf32>
    tpu.vector_store %arg13[%c8, %c0_23], %15 {strides = array<i32>} : memref<72x384xf32, #tpu.memory_space<vmem>>, vector<8x384xf32>,
    %c0_24 = arith.constant 0 : index
    %c2 = arith.constant 2 : index
    %17 = vector.load %arg12[%c0_24, %c2] : memref<8x422xf32, #tpu.memory_space<vmem>>, vector<8x384xf32>
    %c16 = arith.constant 16 : index
    %c0_25 = arith.constant 0 : index
    %18 = vector.load %arg13[%c16, %c0_25] : memref<72x384xf32, #tpu.memory_space<vmem>>, vector<8x384xf32>
    tpu.vector_store %arg13[%c16, %c0_25], %17 {strides = array<i32>} : memref<72x384xf32, #tpu.memory_space<vmem>>, vector<8x384xf32>,
    %c0_26 = arith.constant 0 : index
    %c18 = arith.constant 18 : index
    %19 = vector.load %arg12[%c0_26, %c18] : memref<8x422xf32, #tpu.memory_space<vmem>>, vector<8x384xf32>
    %c24 = arith.constant 24 : index
    %c0_27 = arith.constant 0 : index
    %20 = vector.load %arg13[%c24, %c0_27] : memref<72x384xf32, #tpu.memory_space<vmem>>, vector<8x384xf32>
    tpu.vector_store %arg13[%c24, %c0_27], %19 {strides = array<i32>} : memref<72x384xf32, #tpu.memory_space<vmem>>, vector<8x384xf32>,
    %c0_28 = arith.constant 0 : index
    %c19_29 = arith.constant 19 : index
    %21 = vector.load %arg12[%c0_28, %c19_29] : memref<8x422xf32, #tpu.memory_space<vmem>>, vector<8x384xf32>
    %c32 = arith.constant 32 : index
    %c0_30 = arith.constant 0 : index
    %22 = vector.load %arg13[%c32, %c0_30] : memref<72x384xf32, #tpu.memory_space<vmem>>, vector<8x384xf32>
    tpu.vector_store %arg13[%c32, %c0_30], %21 {strides = array<i32>} : memref<72x384xf32, #tpu.memory_space<vmem>>, vector<8x384xf32>,
    %c0_31 = arith.constant 0 : index
    %c20 = arith.constant 20 : index
    %23 = vector.load %arg12[%c0_31, %c20] : memref<8x422xf32, #tpu.memory_space<vmem>>, vector<8x384xf32>
    %c40 = arith.constant 40 : index
    %c0_32 = arith.constant 0 : index
    %24 = vector.load %arg13[%c40, %c0_32] : memref<72x384xf32, #tpu.memory_space<vmem>>, vector<8x384xf32>
    tpu.vector_store %arg13[%c40, %c0_32], %23 {strides = array<i32>} : memref<72x384xf32, #tpu.memory_space<vmem>>, vector<8x384xf32>,
    %c0_33 = arith.constant 0 : index
    %c36 = arith.constant 36 : index
    %25 = vector.load %arg12[%c0_33, %c36] : memref<8x422xf32, #tpu.memory_space<vmem>>, vector<8x384xf32>
    %c48 = arith.constant 48 : index
    %c0_34 = arith.constant 0 : index
    %26 = vector.load %arg13[%c48, %c0_34] : memref<72x384xf32, #tpu.memory_space<vmem>>, vector<8x384xf32>
    tpu.vector_store %arg13[%c48, %c0_34], %25 {strides = array<i32>} : memref<72x384xf32, #tpu.memory_space<vmem>>, vector<8x384xf32>,
    %c0_35 = arith.constant 0 : index
    %c37 = arith.constant 37 : index
    %27 = vector.load %arg12[%c0_35, %c37] : memref<8x422xf32, #tpu.memory_space<vmem>>, vector<8x384xf32>
    %c56 = arith.constant 56 : index
    %c0_36 = arith.constant 0 : index
    %28 = vector.load %arg13[%c56, %c0_36] : memref<72x384xf32, #tpu.memory_space<vmem>>, vector<8x384xf32>
    tpu.vector_store %arg13[%c56, %c0_36], %27 {strides = array<i32>} : memref<72x384xf32, #tpu.memory_space<vmem>>, vector<8x384xf32>,
    %c0_37 = arith.constant 0 : index
    %c38 = arith.constant 38 : index
    %29 = vector.load %arg12[%c0_37, %c38] : memref<8x422xf32, #tpu.memory_space<vmem>>, vector<8x384xf32>
    %c64 = arith.constant 64 : index
    %c0_38 = arith.constant 0 : index
    %30 = vector.load %arg13[%c64, %c0_38] : memref<72x384xf32, #tpu.memory_space<vmem>>, vector<8x384xf32>
    tpu.vector_store %arg13[%c64, %c0_38], %29 {strides = array<i32>} : memref<72x384xf32, #tpu.memory_space<vmem>>, vector<8x384xf32>,
    %c0_39 = arith.constant 0 : index
    %c0_40 = arith.constant 0 : index
    %31 = vector.load %arg13[%c0_39, %c0_40] : memref<72x384xf32, #tpu.memory_space<vmem>>, vector<72x384xf32>
    %cst_41 = arith.constant dense<0.000000e+00> : vector<4x384xf32>
    %32 = tpu.matmul %11, %31, %cst_41 {dimension_numbers = #tpu.dot_dimension_numbers<[1], [0], [0], [1], [0, 0, 1, 1], [], []>} : vector<4x72xf32>, vector<72x384xf32>, vector<4x384xf32> -> vector<4x384xf32>
    %33 = vector.broadcast %12 : vector<4x1xf32> to vector<4x384xf32>
    %34 = arith.addf %32, %33 : vector<4x384xf32>
    %35 = vector.broadcast %0 : vector<1x384xf32> to vector<4x384xf32>
    %36 = arith.mulf %34, %35 : vector<4x384xf32>
    %cst_42 = arith.constant 0.000000e+00 : f32
    %37 = vector.broadcast %cst_42 : f32 to vector<4x384xf32>
    %38 = arith.maximumf %36, %37 : vector<4x384xf32>
    %39 = math.absf %36 : vector<4x384xf32>
    %cst_43 = arith.constant 0.000000e+00 : f32
    %40 = vector.broadcast %cst_43 : f32 to vector<4x384xf32>
    %41 = arith.subf %40, %39 : vector<4x384xf32>
    %42 = math.exp %41 : vector<4x384xf32>
    %43 = math.log1p %42 : vector<4x384xf32>
    %44 = arith.addf %38, %43 : vector<4x384xf32>
    %45 = math.tanh %44 : vector<4x384xf32>
    %46 = arith.mulf %36, %45 : vector<4x384xf32>
    %c0_44 = arith.constant 0 : index
    %c19_45 = arith.constant 19 : index
    %47 = vector.load %arg12[%c0_44, %c19_45] : memref<8x422xf32, #tpu.memory_space<vmem>>, vector<4x384xf32>
    tpu.vector_store %arg12[%c0_44, %c19_45], %46 {strides = array<i32>} : memref<8x422xf32, #tpu.memory_space<vmem>>, vector<4x384xf32>,
    %c0_46 = arith.constant 0 : index
    %c0_47 = arith.constant 0 : index
    %48 = vector.load %arg6[%c0_46, %c0_47] : memref<4x36xf32, #tpu.memory_space<vmem>>, vector<4x36xf32>
    %c0_48 = arith.constant 0 : index
    %c0_49 = arith.constant 0 : index
    %49 = vector.load %arg7[%c0_48, %c0_49] : memref<4x1xf32, #tpu.memory_space<vmem>>, vector<4x1xf32>
    %c0_50 = arith.constant 0 : index
    %c0_51 = arith.constant 0 : index
    %50 = vector.load %arg12[%c0_50, %c0_51] : memref<8x422xf32, #tpu.memory_space<vmem>>, vector<4x384xf32>
    %c0_52 = arith.constant 0 : index
    %c0_53 = arith.constant 0 : index
    %51 = vector.load %arg13[%c0_52, %c0_53] : memref<72x384xf32, #tpu.memory_space<vmem>>, vector<4x384xf32>
    tpu.vector_store %arg13[%c0_52, %c0_53], %50 {strides = array<i32>} : memref<72x384xf32, #tpu.memory_space<vmem>>, vector<4x384xf32>,
    %c0_54 = arith.constant 0 : index
    %c1_55 = arith.constant 1 : index
    %52 = vector.load %arg12[%c0_54, %c1_55] : memref<8x422xf32, #tpu.memory_space<vmem>>, vector<4x384xf32>
    %c4_56 = arith.constant 4 : index
    %c0_57 = arith.constant 0 : index
    %53 = vector.load %arg13[%c4_56, %c0_57] : memref<72x384xf32, #tpu.memory_space<vmem>>, vector<4x384xf32>
    tpu.vector_store %arg13[%c4_56, %c0_57], %52 {strides = array<i32>} : memref<72x384xf32, #tpu.memory_space<vmem>>, vector<4x384xf32>,
    %c0_58 = arith.constant 0 : index
    %c2_59 = arith.constant 2 : index
    %54 = vector.load %arg12[%c0_58, %c2_59] : memref<8x422xf32, #tpu.memory_space<vmem>>, vector<4x384xf32>
    %c8_60 = arith.constant 8 : index
    %c0_61 = arith.constant 0 : index
    %55 = vector.load %arg13[%c8_60, %c0_61] : memref<72x384xf32, #tpu.memory_space<vmem>>, vector<4x384xf32>
    tpu.vector_store %arg13[%c8_60, %c0_61], %54 {strides = array<i32>} : memref<72x384xf32, #tpu.memory_space<vmem>>, vector<4x384xf32>,
    %c0_62 = arith.constant 0 : index
    %c18_63 = arith.constant 18 : index
    %56 = vector.load %arg12[%c0_62, %c18_63] : memref<8x422xf32, #tpu.memory_space<vmem>>, vector<4x384xf32>
    %c12 = arith.constant 12 : index
    %c0_64 = arith.constant 0 : index
    %57 = vector.load %arg13[%c12, %c0_64] : memref<72x384xf32, #tpu.memory_space<vmem>>, vector<4x384xf32>
    tpu.vector_store %arg13[%c12, %c0_64], %56 {strides = array<i32>} : memref<72x384xf32, #tpu.memory_space<vmem>>, vector<4x384xf32>,
    %c0_65 = arith.constant 0 : index
    %c19_66 = arith.constant 19 : index
    %58 = vector.load %arg12[%c0_65, %c19_66] : memref<8x422xf32, #tpu.memory_space<vmem>>, vector<4x384xf32>
    %c16_67 = arith.constant 16 : index
    %c0_68 = arith.constant 0 : index
    %59 = vector.load %arg13[%c16_67, %c0_68] : memref<72x384xf32, #tpu.memory_space<vmem>>, vector<4x384xf32>
    tpu.vector_store %arg13[%c16_67, %c0_68], %58 {strides = array<i32>} : memref<72x384xf32, #tpu.memory_space<vmem>>, vector<4x384xf32>,
    %c0_69 = arith.constant 0 : index
    %c20_70 = arith.constant 20 : index
    %60 = vector.load %arg12[%c0_69, %c20_70] : memref<8x422xf32, #tpu.memory_space<vmem>>, vector<4x384xf32>
    %c20_71 = arith.constant 20 : index
    %c0_72 = arith.constant 0 : index
    %61 = vector.load %arg13[%c20_71, %c0_72] : memref<72x384xf32, #tpu.memory_space<vmem>>, vector<4x384xf32>
    tpu.vector_store %arg13[%c20_71, %c0_72], %60 {strides = array<i32>} : memref<72x384xf32, #tpu.memory_space<vmem>>, vector<4x384xf32>,
    %c0_73 = arith.constant 0 : index
    %c36_74 = arith.constant 36 : index
    %62 = vector.load %arg12[%c0_73, %c36_74] : memref<8x422xf32, #tpu.memory_space<vmem>>, vector<4x384xf32>
    %c24_75 = arith.constant 24 : index
    %c0_76 = arith.constant 0 : index
    %63 = vector.load %arg13[%c24_75, %c0_76] : memref<72x384xf32, #tpu.memory_space<vmem>>, vector<4x384xf32>
    tpu.vector_store %arg13[%c24_75, %c0_76], %62 {strides = array<i32>} : memref<72x384xf32, #tpu.memory_space<vmem>>, vector<4x384xf32>,
    %c0_77 = arith.constant 0 : index
    %c37_78 = arith.constant 37 : index
    %64 = vector.load %arg12[%c0_77, %c37_78] : memref<8x422xf32, #tpu.memory_space<vmem>>, vector<4x384xf32>
    %c28 = arith.constant 28 : index
    %c0_79 = arith.constant 0 : index
    %65 = vector.load %arg13[%c28, %c0_79] : memref<72x384xf32, #tpu.memory_space<vmem>>, vector<4x384xf32>
    tpu.vector_store %arg13[%c28, %c0_79], %64 {strides = array<i32>} : memref<72x384xf32, #tpu.memory_space<vmem>>, vector<4x384xf32>,
    %c0_80 = arith.constant 0 : index
    %c38_81 = arith.constant 38 : index
    %66 = vector.load %arg12[%c0_80, %c38_81] : memref<8x422xf32, #tpu.memory_space<vmem>>, vector<4x384xf32>
    %c32_82 = arith.constant 32 : index
    %c0_83 = arith.constant 0 : index
    %67 = vector.load %arg13[%c32_82, %c0_83] : memref<72x384xf32, #tpu.memory_space<vmem>>, vector<4x384xf32>
    tpu.vector_store %arg13[%c32_82, %c0_83], %66 {strides = array<i32>} : memref<72x384xf32, #tpu.memory_space<vmem>>, vector<4x384xf32>,
    %c0_84 = arith.constant 0 : index
    %c0_85 = arith.constant 0 : index
    %68 = vector.load %arg13[%c0_84, %c0_85] : memref<72x384xf32, #tpu.memory_space<vmem>>, vector<36x384xf32>
    %cst_86 = arith.constant dense<0.000000e+00> : vector<4x384xf32>
    %69 = tpu.matmul %48, %68, %cst_86 {dimension_numbers = #tpu.dot_dimension_numbers<[1], [0], [0], [1], [0, 0, 1, 1], [], []>} : vector<4x36xf32>, vector<36x384xf32>, vector<4x384xf32> -> vector<4x384xf32>
    %70 = vector.broadcast %49 : vector<4x1xf32> to vector<4x384xf32>
    %71 = arith.addf %69, %70 : vector<4x384xf32>
    %cst_87 = arith.constant 0.000000e+00 : f32
    %72 = vector.broadcast %cst_87 : f32 to vector<4x384xf32>
    %73 = arith.maximumf %71, %72 : vector<4x384xf32>
    %74 = math.absf %71 : vector<4x384xf32>
    %cst_88 = arith.constant 0.000000e+00 : f32
    %75 = vector.broadcast %cst_88 : f32 to vector<4x384xf32>
    %76 = arith.subf %75, %74 : vector<4x384xf32>
    %77 = math.exp %76 : vector<4x384xf32>
    %78 = math.log1p %77 : vector<4x384xf32>
    %79 = arith.addf %73, %78 : vector<4x384xf32>
    %80 = math.tanh %79 : vector<4x384xf32>
    %81 = arith.mulf %71, %80 : vector<4x384xf32>
    %c0_89 = arith.constant 0 : index
    %c0_90 = arith.constant 0 : index
    %82 = vector.load %arg8[%c0_89, %c0_90] : memref<8x4xf32, #tpu.memory_space<vmem>>, vector<8x4xf32>
    %cst_91 = arith.constant dense<0.000000e+00> : vector<8x384xf32>
    %83 = tpu.matmul %82, %81, %cst_91 {dimension_numbers = #tpu.dot_dimension_numbers<[1], [0], [0], [1], [0, 0, 1, 1], [], []>} : vector<8x4xf32>, vector<4x384xf32>, vector<8x384xf32> -> vector<8x384xf32>
    %c0_92 = arith.constant 0 : index
    %c0_93 = arith.constant 0 : index
    %84 = vector.load %arg9[%c0_92, %c0_93] : memref<8x1xf32, #tpu.memory_space<vmem>>, vector<8x1xf32>
    %85 = vector.broadcast %84 : vector<8x1xf32> to vector<8x384xf32>
    %86 = arith.addf %83, %85 : vector<8x384xf32>
    %87 = vector.shape_cast %86 : vector<8x384xf32> to vector<1x8x384xf32>
    %c0_94 = arith.constant 0 : index
    %c0_95 = arith.constant 0 : index
    %c0_96 = arith.constant 0 : index
    %88 = vector.load %arg11[%c0_94, %c0_95, %c0_96] : memref<1x8x384xf32, #tpu.memory_space<vmem>>, vector<1x8x384xf32>
    tpu.vector_store %arg11[%c0_94, %c0_95, %c0_96], %87 {strides = array<i32>} : memref<1x8x384xf32, #tpu.memory_space<vmem>>, vector<1x8x384xf32>,
    return
  }
  func.func @transform_0(%arg0: i32) -> (i32, i32, i32) {
    %c0_i32 = arith.constant 0 : i32
    %c0_i32_0 = arith.constant 0 : i32
    %c0_i32_1 = arith.constant 0 : i32
    return %arg0, %c0_i32, %c0_i32_0 : i32, i32, i32
  }
  func.func @transform_1(%arg0: i32) -> (i32, i32, i32) {
    %c0_i32 = arith.constant 0 : i32
    %c0_i32_0 = arith.constant 0 : i32
    %c0_i32_1 = arith.constant 0 : i32
    return %arg0, %c0_i32, %c0_i32_0 : i32, i32, i32
  }
  func.func @transform_2(%arg0: i32) -> (i32, i32) {
    %c0_i32 = arith.constant 0 : i32
    %c0_i32_0 = arith.constant 0 : i32
    %c0_i32_1 = arith.constant 0 : i32
    return %c0_i32, %c0_i32_0 : i32, i32
  }
  func.func @transform_3(%arg0: i32) -> (i32, i32) {
    %c0_i32 = arith.constant 0 : i32
    %c0_i32_0 = arith.constant 0 : i32
    %c0_i32_1 = arith.constant 0 : i32
    return %c0_i32, %c0_i32_0 : i32, i32
  }
  func.func @transform_4(%arg0: i32) -> (i32, i32) {
    %c0_i32 = arith.constant 0 : i32
    %c0_i32_0 = arith.constant 0 : i32
    %c0_i32_1 = arith.constant 0 : i32
    return %c0_i32, %c0_i32_0 : i32, i32
  }
  func.func @transform_5(%arg0: i32) -> (i32, i32) {
    %c0_i32 = arith.constant 0 : i32
    %c0_i32_0 = arith.constant 0 : i32
    %c0_i32_1 = arith.constant 0 : i32
    return %c0_i32, %c0_i32_0 : i32, i32
  }
  func.func @transform_6(%arg0: i32) -> (i32, i32) {
    %c0_i32 = arith.constant 0 : i32
    %c0_i32_0 = arith.constant 0 : i32
    %c0_i32_1 = arith.constant 0 : i32
    return %c0_i32, %c0_i32_0 : i32, i32
  }
  func.func @transform_7(%arg0: i32) -> (i32, i32) {
    %c0_i32 = arith.constant 0 : i32
    %c0_i32_0 = arith.constant 0 : i32
    %c0_i32_1 = arith.constant 0 : i32
    return %c0_i32, %c0_i32_0 : i32, i32
  }
  func.func @transform_8(%arg0: i32) -> (i32, i32) {
    %c0_i32 = arith.constant 0 : i32
    %c0_i32_0 = arith.constant 0 : i32
    %c0_i32_1 = arith.constant 0 : i32
    return %c0_i32, %c0_i32_0 : i32, i32
  }
  func.func @transform_9(%arg0: i32) -> (i32, i32) {
    %c0_i32 = arith.constant 0 : i32
    %c0_i32_0 = arith.constant 0 : i32
    %c0_i32_1 = arith.constant 0 : i32
    return %c0_i32, %c0_i32_0 : i32, i32
  }
  func.func @transform_10(%arg0: i32) -> (i32, i32, i32) {
    %c0_i32 = arith.constant 0 : i32
    %c0_i32_0 = arith.constant 0 : i32
    %c0_i32_1 = arith.constant 0 : i32
    return %arg0, %c0_i32, %c0_i32_0 : i32, i32, i32
  }
}

</mosaic_0001>

<llo_original>
// kernel: tpu_custom_call.1
$region0: #{tpu_custom_call.1}
  #allocation0 [shape = 'u32[]', space=smem, size = 0x4, offset = 0x4, fixed_abs, tag = 'smem constant byte address 0x4 - core index']
  #allocation1 [shape = 'u32[144,128]{1,0:T(1,128)}', space=vmem, size = 0x12000, scoped, tag = 'internal scratch']
  #allocation2 [shape = 'f32[8,422]{1,0:T(8,128)}', space=vmem, size = 0x4000, scoped, tag = 'scratch operand']
  #allocation3 [shape = 'f32[72,384]{1,0:T(8,128)}', space=vmem, size = 0x1b000, scoped, tag = 'scratch operand']
  %s0 = inlined_call_operand.vmem [shape: f32[2,4,64], index: 0, kind: input, shape index: {}]
  %s1 = inlined_call_operand.vmem [shape: f32[2,4,384], index: 1, kind: input, shape index: {}]
  %s2 = inlined_call_operand.hbm [shape: f32[64,384], index: 2, kind: input, shape index: {}]
  %s3 = inlined_call_operand.vmem [shape: f32[4,72], index: 3, kind: input, shape index: {}]
  %s4 = inlined_call_operand.vmem [shape: f32[4,1], index: 4, kind: input, shape index: {}]
  %s5 = inlined_call_operand.vmem [shape: f32[4,36], index: 5, kind: input, shape index: {}]
  %s6 = inlined_call_operand.vmem [shape: f32[4,1], index: 6, kind: input, shape index: {}]
  %s7 = inlined_call_operand.vmem [shape: f32[8,4], index: 7, kind: input, shape index: {}]
  %s8 = inlined_call_operand.vmem [shape: f32[8,1], index: 8, kind: input, shape index: {}]
  %s9 = inlined_call_operand.vmem [shape: f32[1,384], index: 9, kind: input, shape index: {}]
  %s10 = inlined_call_operand.hbm [shape: f32[2,8,384], index: 10, kind: output, shape index: {}]
  %s11 = sld [smem:[#allocation0]]
  $region77: #{tpu_custom_call.1} parent=0
    _
  %s13 = ssub.s32 1, %s11
  %s14 = scalar_select 0, %s13, %s11
  $region1: #{tpu_custom_call.1} parent=0
    #allocation4 [shape = 'u8[98304]{0}', space=vmem, size = 0x18000, scoped, tag = 'input window, operand 2, single buffered']
    #allocation5 [shape = 's32[2]{0}', space=sflag, size = 0x8, scoped, tag = 'scoped memory for tpu_custom_call.1']
    #allocation6 [shape = 's32[2]{0}', space=sflag, size = 0x8, scoped, tag = 'scoped memory for tpu_custom_call.1']
    #allocation7 [shape = 'u8[24576]{0}', space=vmem, size = 0x6000, scoped, tag = 'output window, operand 0']
    %15 = vsyncpa [#allocation5], 0
    %16 = vsyncpa [#allocation6], 0
    %s17 = scalar_lea.sflag [#allocation6], 1
    %18 = vsyncpa %s17, 0
    loop: start=0, step=1, limit=4
    $region2: #{tpu_custom_call.1} parent=1 // loop_pre_header
      _
    $region3: #{tpu_custom_call.1} parent=1 // loop_header
      %s20 = sphi 0, %s24
      %p21 = scmp.ge.s32.totalorder %s20, 4
      %s30 = sphi 0, %s32
      %s33 = sphi 0, %s30
      %s34 = sphi 0, %s33
      %s50 = sphi 0, %s34
      %s56 = sphi 0, %s58
      %s59 = sphi 0, %s56
      %s60 = sphi 0, %s59
      %s76 = sphi 0, %s60
      %s80 = sphi 0, %s80
      %s82 = sphi 0, %s80
      %s83 = sphi 0, %s82
      %s97 = sphi 0, %s83
      %s101 = sphi 0, %s101
      %s103 = sphi 0, %s101
      %s104 = sphi 0, %s103
      %s118 = sphi 0, %s104
      %s122 = sphi 0, %s122
      %s124 = sphi 0, %s122
      %s125 = sphi 0, %s124
      %s139 = sphi 0, %s125
      %s143 = sphi 0, %s143
      %s145 = sphi 0, %s143
      %s146 = sphi 0, %s145
      %s160 = sphi 0, %s146
      %s164 = sphi 0, %s164
      %s166 = sphi 0, %s164
      %s167 = sphi 0, %s166
      %s181 = sphi 0, %s167
      %s185 = sphi 0, %s185
      %s187 = sphi 0, %s185
      %s188 = sphi 0, %s187
      %s202 = sphi 0, %s188
      %s206 = sphi 0, %s206
      %s208 = sphi 0, %s206
      %s209 = sphi 0, %s208
      %s223 = sphi 0, %s209
      %s227 = sphi 0, %s227
      %s229 = sphi 0, %s227
      %s230 = sphi 0, %s229
      %s244 = sphi 0, %s230
      %s250 = sphi 0, %s252
      %s253 = sphi 0, %s250
      %s254 = sphi 0, %s253
      %s270 = sphi 0, %s254
    $region4: #{tpu_custom_call.1} parent=1 // loop_header_branch
      %23 = sbr.rel (%p21) target = $region8
    $region5: #{tpu_custom_call.1} parent=1 // loop_body
      %s25 = ssub.s32 %s20, 1
      %s26 = ssub.s32 %s20, 2
      %s27 = sadd.s32 %s20, 1
      %s28 = ssub.s32 %s20, %s27
      %p29 = scmp.eq.s32.totalorder %s28, 0
      %s31 = sadd.s32 %s30, 1
      %s32 = scalar_select %p29, %s30, %s31
      %p35 = pneg %p29
      %p36 = scmp.eq.s32.totalorder %s20, 1
      %p37 = por %p35, %p36
      %p38 = scmp.ne.s32.totalorder %s30, %s33
      %p39 = scmp.eq.s32.totalorder %s20, 0
      %p40 = por %p38, %p39
      %p41 = scmp.ne.s32.totalorder %s30, %s33
      %p42 = scmp.eq.s32.totalorder %s25, 1
      %p43 = por %p41, %p42
      %p44 = scmp.ne.s32.totalorder %s33, %s34
      %p45 = scmp.eq.s32.totalorder %s25, 0
      %p46 = por %p44, %p45
      %p47 = scmp.ne.s32.totalorder %s33, %s34
      %p48 = scmp.eq.s32.totalorder %s26, 1
      %p49 = por %p47, %p48
      %p51 = scmp.ne.s32.totalorder %s34, %s50
      %p52 = scmp.eq.s32.totalorder %s26, 0
      %p53 = por %p51, %p52
      %s54 = ssub.s32 %s20, %s27
      %p55 = scmp.eq.s32.totalorder %s54, 0
      %s57 = sadd.s32 %s56, 1
      %s58 = scalar_select %p55, %s56, %s57
      %p61 = pneg %p55
      %p62 = scmp.eq.s32.totalorder %s20, 1
      %p63 = por %p61, %p62
      %p64 = scmp.ne.s32.totalorder %s56, %s59
      %p65 = scmp.eq.s32.totalorder %s20, 0
      %p66 = por %p64, %p65
      %p67 = scmp.ne.s32.totalorder %s56, %s59
      %p68 = scmp.eq.s32.totalorder %s25, 1
      %p69 = por %p67, %p68
      %p70 = scmp.ne.s32.totalorder %s59, %s60
      %p71 = scmp.eq.s32.totalorder %s25, 0
      %p72 = por %p70, %p71
      %p73 = scmp.ne.s32.totalorder %s59, %s60
      %p74 = scmp.eq.s32.totalorder %s26, 1
      %p75 = por %p73, %p74
      %p77 = scmp.ne.s32.totalorder %s60, %s76
      %p78 = scmp.eq.s32.totalorder %s26, 0
      %p79 = por %p77, %p78
      %s81 = sadd.s32 %s80, 1
      %p84 = scmp.eq.s32.totalorder %s20, 1
      %p85 = scmp.ne.s32.totalorder %s80, %s82
      %p86 = scmp.eq.s32.totalorder %s20, 0
      %p87 = por %p85, %p86
      %p88 = scmp.ne.s32.totalorder %s80, %s82
      %p89 = scmp.eq.s32.totalorder %s25, 1
      %p90 = por %p88, %p89
      %p91 = scmp.ne.s32.totalorder %s82, %s83
      %p92 = scmp.eq.s32.totalorder %s25, 0
      %p93 = por %p91, %p92
      %p94 = scmp.ne.s32.totalorder %s82, %s83
      %p95 = scmp.eq.s32.totalorder %s26, 1
      %p96 = por %p94, %p95
      %p98 = scmp.ne.s32.totalorder %s83, %s97
      %p99 = scmp.eq.s32.totalorder %s26, 0
      %p100 = por %p98, %p99
      %s102 = sadd.s32 %s101, 1
      %p105 = scmp.eq.s32.totalorder %s20, 1
      %p106 = scmp.ne.s32.totalorder %s101, %s103
      %p107 = scmp.eq.s32.totalorder %s20, 0
      %p108 = por %p106, %p107
      %p109 = scmp.ne.s32.totalorder %s101, %s103
      %p110 = scmp.eq.s32.totalorder %s25, 1
      %p111 = por %p109, %p110
      %p112 = scmp.ne.s32.totalorder %s103, %s104
      %p113 = scmp.eq.s32.totalorder %s25, 0
      %p114 = por %p112, %p113
      %p115 = scmp.ne.s32.totalorder %s103, %s104
      %p116 = scmp.eq.s32.totalorder %s26, 1
      %p117 = por %p115, %p116
      %p119 = scmp.ne.s32.totalorder %s104, %s118
      %p120 = scmp.eq.s32.totalorder %s26, 0
      %p121 = por %p119, %p120
      %s123 = sadd.s32 %s122, 1
      %p126 = scmp.eq.s32.totalorder %s20, 1
      %p127 = scmp.ne.s32.totalorder %s122, %s124
      %p128 = scmp.eq.s32.totalorder %s20, 0
      %p129 = por %p127, %p128
      %p130 = scmp.ne.s32.totalorder %s122, %s124
      %p131 = scmp.eq.s32.totalorder %s25, 1
      %p132 = por %p130, %p131
      %p133 = scmp.ne.s32.totalorder %s124, %s125
      %p134 = scmp.eq.s32.totalorder %s25, 0
      %p135 = por %p133, %p134
      %p136 = scmp.ne.s32.totalorder %s124, %s125
      %p137 = scmp.eq.s32.totalorder %s26, 1
      %p138 = por %p136, %p137
      %p140 = scmp.ne.s32.totalorder %s125, %s139
      %p141 = scmp.eq.s32.totalorder %s26, 0
      %p142 = por %p140, %p141
      %s144 = sadd.s32 %s143, 1
      %p147 = scmp.eq.s32.totalorder %s20, 1
      %p148 = scmp.ne.s32.totalorder %s143, %s145
      %p149 = scmp.eq.s32.totalorder %s20, 0
      %p150 = por %p148, %p149
      %p151 = scmp.ne.s32.totalorder %s143, %s145
      %p152 = scmp.eq.s32.totalorder %s25, 1
      %p153 = por %p151, %p152
      %p154 = scmp.ne.s32.totalorder %s145, %s146
      %p155 = scmp.eq.s32.totalorder %s25, 0
      %p156 = por %p154, %p155
      %p157 = scmp.ne.s32.totalorder %s145, %s146
      %p158 = scmp.eq.s32.totalorder %s26, 1
      %p159 = por %p157, %p158
      %p161 = scmp.ne.s32.totalorder %s146, %s160
      %p162 = scmp.eq.s32.totalorder %s26, 0
      %p163 = por %p161, %p162
      %s165 = sadd.s32 %s164, 1
      %p168 = scmp.eq.s32.totalorder %s20, 1
      %p169 = scmp.ne.s32.totalorder %s164, %s166
      %p170 = scmp.eq.s32.totalorder %s20, 0
      %p171 = por %p169, %p170
      %p172 = scmp.ne.s32.totalorder %s164, %s166
      %p173 = scmp.eq.s32.totalorder %s25, 1
      %p174 = por %p172, %p173
      %p175 = scmp.ne.s32.totalorder %s166, %s167
      %p176 = scmp.eq.s32.totalorder %s25, 0
      %p177 = por %p175, %p176
      %p178 = scmp.ne.s32.totalorder %s166, %s167
      %p179 = scmp.eq.s32.totalorder %s26, 1
      %p180 = por %p178, %p179
      %p182 = scmp.ne.s32.totalorder %s167, %s181
      %p183 = scmp.eq.s32.totalorder %s26, 0
      %p184 = por %p182, %p183
      %s186 = sadd.s32 %s185, 1
      %p189 = scmp.eq.s32.totalorder %s20, 1
      %p190 = scmp.ne.s32.totalorder %s185, %s187
      %p191 = scmp.eq.s32.totalorder %s20, 0
      %p192 = por %p190, %p191
      %p193 = scmp.ne.s32.totalorder %s185, %s187
      %p194 = scmp.eq.s32.totalorder %s25, 1
      %p195 = por %p193, %p194
      %p196 = scmp.ne.s32.totalorder %s187, %s188
      %p197 = scmp.eq.s32.totalorder %s25, 0
      %p198 = por %p196, %p197
      %p199 = scmp.ne.s32.totalorder %s187, %s188
      %p200 = scmp.eq.s32.totalorder %s26, 1
      %p201 = por %p199, %p200
      %p203 = scmp.ne.s32.totalorder %s188, %s202
      %p204 = scmp.eq.s32.totalorder %s26, 0
      %p205 = por %p203, %p204
      %s207 = sadd.s32 %s206, 1
      %p210 = scmp.eq.s32.totalorder %s20, 1
      %p211 = scmp.ne.s32.totalorder %s206, %s208
      %p212 = scmp.eq.s32.totalorder %s20, 0
      %p213 = por %p211, %p212
      %p214 = scmp.ne.s32.totalorder %s206, %s208
      %p215 = scmp.eq.s32.totalorder %s25, 1
      %p216 = por %p214, %p215
      %p217 = scmp.ne.s32.totalorder %s208, %s209
      %p218 = scmp.eq.s32.totalorder %s25, 0
      %p219 = por %p217, %p218
      %p220 = scmp.ne.s32.totalorder %s208, %s209
      %p221 = scmp.eq.s32.totalorder %s26, 1
      %p222 = por %p220, %p221
      %p224 = scmp.ne.s32.totalorder %s209, %s223
      %p225 = scmp.eq.s32.totalorder %s26, 0
      %p226 = por %p224, %p225
      %s228 = sadd.s32 %s227, 1
      %p231 = scmp.eq.s32.totalorder %s20, 1
      %p232 = scmp.ne.s32.totalorder %s227, %s229
      %p233 = scmp.eq.s32.totalorder %s20, 0
      %p234 = por %p232, %p233
      %p235 = scmp.ne.s32.totalorder %s227, %s229
      %p236 = scmp.eq.s32.totalorder %s25, 1
      %p237 = por %p235, %p236
      %p238 = scmp.ne.s32.totalorder %s229, %s230
      %p239 = scmp.eq.s32.totalorder %s25, 0
      %p240 = por %p238, %p239
      %p241 = scmp.ne.s32.totalorder %s229, %s230
      %p242 = scmp.eq.s32.totalorder %s26, 1
      %p243 = por %p241, %p242
      %p245 = scmp.ne.s32.totalorder %s230, %s244
      %p246 = scmp.eq.s32.totalorder %s26, 0
      %p247 = por %p245, %p246
      %s248 = ssub.s32 %s20, %s27
      %p249 = scmp.eq.s32.totalorder %s248, 0
      %s251 = sadd.s32 %s250, 1
      %s252 = scalar_select %p249, %s250, %s251
      %p255 = pneg %p249
      %p256 = scmp.eq.s32.totalorder %s20, 1
      %p257 = por %p255, %p256
      %p258 = scmp.ne.s32.totalorder %s250, %s253
      %p259 = scmp.eq.s32.totalorder %s20, 0
      %p260 = por %p258, %p259
      %p261 = scmp.ne.s32.totalorder %s250, %s253
      %p262 = scmp.eq.s32.totalorder %s25, 1
      %p263 = por %p261, %p262
      %p264 = scmp.ne.s32.totalorder %s253, %s254
      %p265 = scmp.eq.s32.totalorder %s25, 0
      %p266 = por %p264, %p265
      %p267 = scmp.ne.s32.totalorder %s253, %s254
      %p268 = scmp.eq.s32.totalorder %s26, 1
      %p269 = por %p267, %p268
      %p271 = scmp.ne.s32.totalorder %s254, %s270
      %p272 = scmp.eq.s32.totalorder %s26, 0
      %p273 = por %p271, %p272
      %p274 = scmp.le.s32.totalorder 1, %s20
      %p275 = scmp.lt.s32.totalorder %s20, 3
      %p276 = pnand %p274, %p275
      %p277 = pneg %p276
      // Predicated region
      $region9: #{tpu_custom_call.1} parent=5 // pred_check
        _
      $region10: #{tpu_custom_call.1} parent=5 // pred_check_branch
        %279 = sbr.rel (%p276) target = $region12
      $region11: #{tpu_custom_call.1} parent=5 // pred_region
        %s280 = ssub.s32 %s20, 1
        // Predicated region
        $region13: #{tpu_custom_call.1} parent=11 // pred_check
          %p281 = pneg %p93
        $region14: #{tpu_custom_call.1} parent=11 // pred_check_branch
          %283 = sbr.rel (%p281) target = $region16
        $region15: #{tpu_custom_call.1} parent=11 // pred_region
          %s285 = ssub.s32 3072, 3072
          %286 = vsyncadd [#allocation5], %s285
          %s287 = sshll.u32 [#allocation4], 4
          %s288 = int_to_ptr.vmem [resolvable:$true] %s287
          %293 = dma.hbm_to_vmem [thread:$0]  %s2, 3072, %s288, [#allocation5], 384, 384, 24
        $region16: #{tpu_custom_call.1} parent=11 // pred_fallthru
          _
        // Predicated region
        $region17: #{tpu_custom_call.1} parent=11 // pred_check
          %p294 = pneg %p114
        $region18: #{tpu_custom_call.1} parent=11 // pred_check_branch
          %296 = sbr.rel (%p294) target = $region20
        $region19: #{tpu_custom_call.1} parent=11 // pred_region
          _
        $region20: #{tpu_custom_call.1} parent=11 // pred_fallthru
          _
        // Predicated region
        $region21: #{tpu_custom_call.1} parent=11 // pred_check
          %p297 = pneg %p135
        $region22: #{tpu_custom_call.1} parent=11 // pred_check_branch
          %299 = sbr.rel (%p297) target = $region24
        $region23: #{tpu_custom_call.1} parent=11 // pred_region
          _
        $region24: #{tpu_custom_call.1} parent=11 // pred_fallthru
          _
        // Predicated region
        $region25: #{tpu_custom_call.1} parent=11 // pred_check
          %p300 = pneg %p156
        $region26: #{tpu_custom_call.1} parent=11 // pred_check_branch
          %302 = sbr.rel (%p300) target = $region28
        $region27: #{tpu_custom_call.1} parent=11 // pred_region
          _
        $region28: #{tpu_custom_call.1} parent=11 // pred_fallthru
          _
        // Predicated region
        $region29: #{tpu_custom_call.1} parent=11 // pred_check
          %p303 = pneg %p177
        $region30: #{tpu_custom_call.1} parent=11 // pred_check_branch
          %305 = sbr.rel (%p303) target = $region32
        $region31: #{tpu_custom_call.1} parent=11 // pred_region
          _
        $region32: #{tpu_custom_call.1} parent=11 // pred_fallthru
          _
        // Predicated region
        $region33: #{tpu_custom_call.1} parent=11 // pred_check
          %p306 = pneg %p198
        $region34: #{tpu_custom_call.1} parent=11 // pred_check_branch
          %308 = sbr.rel (%p306) target = $region36
        $region35: #{tpu_custom_call.1} parent=11 // pred_region
          _
        $region36: #{tpu_custom_call.1} parent=11 // pred_fallthru
          _
        // Predicated region
        $region37: #{tpu_custom_call.1} parent=11 // pred_check
          %p309 = pneg %p219
        $region38: #{tpu_custom_call.1} parent=11 // pred_check_branch
          %311 = sbr.rel (%p309) target = $region40
        $region39: #{tpu_custom_call.1} parent=11 // pred_region
          _
        $region40: #{tpu_custom_call.1} parent=11 // pred_fallthru
          _
        // Predicated region
        $region41: #{tpu_custom_call.1} parent=11 // pred_check
          %p312 = pneg %p240
        $region42: #{tpu_custom_call.1} parent=11 // pred_check_branch
          %314 = sbr.rel (%p312) target = $region44
        $region43: #{tpu_custom_call.1} parent=11 // pred_region
          _
        $region44: #{tpu_custom_call.1} parent=11 // pred_fallthru
          _
      $region12: #{tpu_custom_call.1} parent=5 // pred_fallthru
        _
      %p315 = scmp.lt.s32.totalorder %s20, 2
      // Predicated region
      $region45: #{tpu_custom_call.1} parent=5 // pred_check
        %p316 = pneg %p315
      $region46: #{tpu_custom_call.1} parent=5 // pred_check_branch
        %318 = sbr.rel (%p316) target = $region48
      $region47: #{tpu_custom_call.1} parent=5 // pred_region
        // Predicated region
        $region49: #{tpu_custom_call.1} parent=47 // pred_check
          %p319 = pneg %p40
        $region50: #{tpu_custom_call.1} parent=47 // pred_check_branch
          %321 = sbr.rel (%p319) target = $region52
        $region51: #{tpu_custom_call.1} parent=47 // pred_region
          %p322 = scmp.lt.s32.totalorder %s20, 1
          %s323 = scalar_select %p322, %s20, 1
          %s324 = smul.addr %s323, 4
          %s325 = scalar_lea.vmem %s0, %s324
        $region52: #{tpu_custom_call.1} parent=47 // pred_fallthru
          _
        // Predicated region
        $region53: #{tpu_custom_call.1} parent=47 // pred_check
          %p326 = pneg %p66
        $region54: #{tpu_custom_call.1} parent=47 // pred_check_branch
          %328 = sbr.rel (%p326) target = $region56
        $region55: #{tpu_custom_call.1} parent=47 // pred_region
          %p329 = scmp.lt.s32.totalorder %s20, 1
          %s330 = scalar_select %p329, %s20, 1
          %s331 = smul.addr %s330, 3
          %s332 = smul.addr %s331, 4
          %s333 = scalar_lea.vmem %s1, %s332
        $region56: #{tpu_custom_call.1} parent=47 // pred_fallthru
          _
      $region48: #{tpu_custom_call.1} parent=5 // pred_fallthru
        _
      %p334 = scmp.le.s32.totalorder 1, %s20
      %p335 = scmp.lt.s32.totalorder %s20, 3
      %p336 = pnand %p334, %p335
      %p337 = pneg %p336
      // Predicated region
      $region57: #{tpu_custom_call.1} parent=5 // pred_check
        _
      $region58: #{tpu_custom_call.1} parent=5 // pred_check_branch
        %339 = sbr.rel (%p336) target = $region60
      $region59: #{tpu_custom_call.1} parent=5 // pred_region
        %s340 = ssub.s32 %s20, 1
        // Predicated region
        $region61: #{tpu_custom_call.1} parent=59 // pred_check
          %p341 = pneg %p93
        $region62: #{tpu_custom_call.1} parent=59 // pred_check_branch
          %343 = sbr.rel (%p341) target = $region64
        $region63: #{tpu_custom_call.1} parent=59 // pred_region
          %344 = dma.done [#allocation5], 3072
        $region64: #{tpu_custom_call.1} parent=59 // pred_fallthru
          _
        %p345 = scmp.lt.s32.totalorder %s25, 1
        %s346 = scalar_select %p345, %s25, 1
        %s347 = smul.addr %s346, 4
        %s348 = scalar_lea.vmem %s0, %s347
        %p349 = pneg %p46
        %p350 = pneg %p43
        %p351 = scmp.lt.s32.totalorder %s25, 1
        %s352 = scalar_select %p351, %s25, 1
        %s353 = smul.addr %s352, 3
        %s354 = smul.addr %s353, 4
        %s355 = scalar_lea.vmem %s1, %s354
        %p356 = pneg %p72
        %p357 = pneg %p69
        %p358 = pneg %p93
        %p359 = pneg %p90
        %p360 = pneg %p114
        %p361 = pneg %p111
        %p362 = pneg %p135
        %p363 = pneg %p132
        %p364 = pneg %p156
        %p365 = pneg %p153
        %p366 = pneg %p177
        %p367 = pneg %p174
        %p368 = pneg %p198
        %p369 = pneg %p195
        %p370 = pneg %p219
        %p371 = pneg %p216
        %p372 = pneg %p240
        %p373 = pneg %p237
        %p374 = pneg %p266
        %p375 = pneg %p263
        %s376 = sand.u32 %s253, 1
        %s377 = scalar_lea.sflag [#allocation6], %s376
        %s378 = sand.u32 %s253, 1
        %s379 = smul.addr %s378, 24
        %s380 = scalar_lea.vmem [#allocation7], %s379
        %p381 = scmp.lt.s32.totalorder %s25, 1
        %s382 = scalar_select %p381, %s25, 1
        %s383 = smul.addr %s382, 4
        %s384 = scalar_lea.vmem %s0, %s383
        %p385 = scmp.lt.s32.totalorder %s25, 1
        %s386 = scalar_select %p385, %s25, 1
        %s387 = smul.addr %s386, 3
        %s388 = smul.addr %s387, 4
        %s389 = scalar_lea.vmem %s1, %s388
        %v390 = vld [vmem:[%s9] sm:$0x7]
        %391 = vst [vmem:[#allocation2] sm:$0xff] 0.0
        %392 = vst [vmem:[#allocation2 + $0x8] sm:$0xff] 0.0
        %393 = vst [vmem:[#allocation2 + $0x10] sm:$0xff] 0.0
        %vm394 = vcmask 310272
        %395 = vst.msk [vmem:[#allocation2 + $0x18] sm:$0xff] %vm394, 0.0
        %v396 = vld [vmem:[%s384] sm:$0xf]
        %v397 = vld [vmem:[#allocation4] sm:$0xff]
        %v398 = vld [vmem:[#allocation4 + $0x8] sm:$0xff]
        %v399 = vld [vmem:[#allocation4 + $0x10] sm:$0xff]
        %v400 = vld [vmem:[#allocation4 + $0x18] sm:$0xff]
        %v401 = vld [vmem:[#allocation4 + $0x20] sm:$0xff]
        %v402 = vld [vmem:[#allocation4 + $0x28] sm:$0xff]
        %v403 = vld [vmem:[#allocation4 + $0x30] sm:$0xff]
        %v404 = vld [vmem:[#allocation4 + $0x38] sm:$0xff]
        %v405 = vld [vmem:[#allocation4 + $0x40] sm:$0xff]
        %v406 = vld [vmem:[#allocation4 + $0x48] sm:$0xff]
        %v407 = vld [vmem:[#allocation4 + $0x50] sm:$0xff]
        %v408 = vld [vmem:[#allocation4 + $0x58] sm:$0xff]
        %v409 = vld [vmem:[#allocation4 + $0x60] sm:$0xff]
        %v410 = vld [vmem:[#allocation4 + $0x68] sm:$0xff]
        %v411 = vld [vmem:[#allocation4 + $0x70] sm:$0xff]
        %v412 = vld [vmem:[#allocation4 + $0x78] sm:$0xff]
        %v413 = vld [vmem:[#allocation4 + $0x80] sm:$0xff]
        %v414 = vld [vmem:[#allocation4 + $0x88] sm:$0xff]
        %v415 = vld [vmem:[#allocation4 + $0x90] sm:$0xff]
        %v416 = vld [vmem:[#allocation4 + $0x98] sm:$0xff]
        %v417 = vld [vmem:[#allocation4 + $0xa0] sm:$0xff]
        %v418 = vld [vmem:[#allocation4 + $0xa8] sm:$0xff]
        %v419 = vld [vmem:[#allocation4 + $0xb0] sm:$0xff]
        %v420 = vld [vmem:[#allocation4 + $0xb8] sm:$0xff]
        %vm421 = vcmask 523264
        %v423 = vsel %vm421, %v396, 0
        %425 = vmatprep.subr.mxu0 %v398
        %426 = vmatpush1.msra.mxu0 %v397
        %427 = vmatprep.subr.mxu0 %v401
        %428 = vmatpush1.msra.mxu0 %v400
        %429 = vmatprep.subr.mxu0 %v404
        %430 = vmatpush1.msra.mxu0 %v403
        %431 = vmatprep.subr.mxu0 %v407
        %432 = vmatpush1.msra.mxu0 %v406
        %433 = vmatprep.subr.mxu0 %v410
        %434 = vmatpush1.msra.mxu0 %v409
        %435 = vmatprep.subr.mxu0 %v413
        %436 = vmatpush1.msra.mxu0 %v412
        %437 = vmatprep.subr.mxu0 %v416
        %438 = vmatpush1.msra.mxu0 %v415
        %439 = vmatprep.subr.mxu0 %v419
        %440 = vmatpush1.msra.mxu0 %v418
        %441 = vmatprep.subr.mxu0 0.0
        %442 = vmatpush1.msra.mxu0 0.0
        %443 = vmatprep.subr.mxu0 0.0
        %444 = vmatpush1.msra.mxu0 0.0
        %445 = vmatprep.subr.mxu0 0.0
        %446 = vmatpush1.msra.mxu0 0.0
        %447 = vmatprep.subr.mxu0 0.0
        %448 = vmatpush1.msra.mxu0 0.0
        %449 = vmatprep.subr.mxu0 0.0
        %450 = vmatpush1.msra.mxu0 0.0
        %451 = vmatprep.subr.mxu0 0.0
        %452 = vmatpush1.msra.mxu0 0.0
        %453 = vmatprep.subr.mxu0 0.0
        %454 = vmatpush1.msra.mxu0 0.0
        %455 = vmatprep.subr.mxu0 0.0
        %456 = vmatpush1.msra.mxu0 0.0
        %457 = vmatprep.subr.mxu0 0.0
        %458 = vmatpush1.msra.mxu0 0.0
        %459 = vmatprep.subr.mxu0 0.0
        %460 = vmatpush1.msra.mxu0 0.0
        %461 = vmatprep.subr.mxu0 0.0
        %462 = vmatpush1.msra.mxu0 0.0
        %463 = vmatprep.subr.mxu0 0.0
        %464 = vmatpush1.msra.mxu0 0.0
        %465 = vmatprep.subr.mxu0 0.0
        %466 = vmatpush1.msra.mxu0 0.0
        %467 = vmatprep.subr.mxu0 0.0
        %468 = vmatpush1.msra.mxu0 0.0
        %469 = vmatprep.subr.mxu0 0.0
        %470 = vmatpush1.msra.mxu0 0.0
        %471 = vmatprep.subr.mxu0 0.0
        %472 = vmatpush1.msra.mxu0 0.0
        %473 = vmatprep.subr.mxu0 0.0
        %474 = vmatpush1.msra.mxu0 0.0
        %475 = vmatprep.subr.mxu0 0.0
        %476 = vmatpush1.msra.mxu0 0.0
        %477 = vmatprep.subr.mxu0 0.0
        %478 = vmatpush1.msra.mxu0 0.0
        %479 = vmatprep.subr.mxu0 0.0
        %480 = vmatpush1.msra.mxu0 0.0
        %481 = vmatprep.subr.mxu0 0.0
        %482 = vmatpush1.msra.mxu0 0.0
        %483 = vmatprep.subr.mxu0 0.0
        %484 = vmatpush1.msra.mxu0 0.0
        %485 = vmatprep.subr.mxu0 0.0
        %486 = vmatpush1.msra.mxu0 0.0
        %487 = vmatprep.subr.mxu0 0.0
        %488 = vmatpush1.msra.mxu0 0.0
        %489 = vmatprep.mubr.f32.mxu0 0.0
        %490 = vmatmul.mubr.f32.gmra.mrb[0].mxu0 %v423
        %v491 = vpop.f32.mrb[0].mxu0
        %v492 = vadd.f32 0.0, %v491
        %v493 = vpop.f32.mrb[0].mxu0
        %v494 = vadd.f32 0.0, %v493
        %495 = vdwg.mxu0
        %496 = vmatprep.subr.mxu0 0.0
        %497 = vmatpush1.msra.mxu0 %v399
        %498 = vmatprep.subr.mxu0 0.0
        %499 = vmatpush1.msra.mxu0 %v402
        %500 = vmatprep.subr.mxu0 0.0
        %501 = vmatpush1.msra.mxu0 %v405
        %502 = vmatprep.subr.mxu0 0.0
        %503 = vmatpush1.msra.mxu0 %v408
        %504 = vmatprep.subr.mxu0 0.0
        %505 = vmatpush1.msra.mxu0 %v411
        %506 = vmatprep.subr.mxu0 0.0
        %507 = vmatpush1.msra.mxu0 %v414
        %508 = vmatprep.subr.mxu0 0.0
        %509 = vmatpush1.msra.mxu0 %v417
        %510 = vmatprep.subr.mxu0 0.0
        %511 = vmatpush1.msra.mxu0 %v420
        %512 = vmatprep.subr.mxu0 0.0
        %513 = vmatpush1.msra.mxu0 0.0
        %514 = vmatprep.subr.mxu0 0.0
        %515 = vmatpush1.msra.mxu0 0.0
        %516 = vmatprep.subr.mxu0 0.0
        %517 = vmatpush1.msra.mxu0 0.0
        %518 = vmatprep.subr.mxu0 0.0
        %519 = vmatpush1.msra.mxu0 0.0
        %520 = vmatprep.subr.mxu0 0.0
        %521 = vmatpush1.msra.mxu0 0.0
        %522 = vmatprep.subr.mxu0 0.0
        %523 = vmatpush1.msra.mxu0 0.0
        %524 = vmatprep.subr.mxu0 0.0
        %525 = vmatpush1.msra.mxu0 0.0
        %526 = vmatprep.subr.mxu0 0.0
        %527 = vmatpush1.msra.mxu0 0.0
        %528 = vmatprep.subr.mxu0 0.0
        %529 = vmatpush1.msra.mxu0 0.0
        %530 = vmatprep.subr.mxu0 0.0
        %531 = vmatpush1.msra.mxu0 0.0
        %532 = vmatprep.subr.mxu0 0.0
        %533 = vmatpush1.msra.mxu0 0.0
        %534 = vmatprep.subr.mxu0 0.0
        %535 = vmatpush1.msra.mxu0 0.0
        %536 = vmatprep.subr.mxu0 0.0
        %537 = vmatpush1.msra.mxu0 0.0
        %538 = vmatprep.subr.mxu0 0.0
        %539 = vmatpush1.msra.mxu0 0.0
        %540 = vmatprep.subr.mxu0 0.0
        %541 = vmatpush1.msra.mxu0 0.0
        %542 = vmatprep.subr.mxu0 0.0
        %543 = vmatpush1.msra.mxu0 0.0
        %544 = vmatprep.subr.mxu0 0.0
        %545 = vmatpush1.msra.mxu0 0.0
        %546 = vmatprep.subr.mxu0 0.0
        %547 = vmatpush1.msra.mxu0 0.0
        %548 = vmatprep.subr.mxu0 0.0
        %549 = vmatpush1.msra.mxu0 0.0
        %550 = vmatprep.subr.mxu0 0.0
        %551 = vmatpush1.msra.mxu0 0.0
        %552 = vmatprep.subr.mxu0 0.0
        %553 = vmatpush1.msra.mxu0 0.0
        %554 = vmatprep.subr.mxu0 0.0
        %555 = vmatpush1.msra.mxu0 0.0
        %556 = vmatprep.subr.mxu0 0.0
        %557 = vmatpush1.msra.mxu0 0.0
        %558 = vmatprep.subr.mxu0 0.0
        %559 = vmatpush1.msra.mxu0 0.0
        %560 = vmatprep.mubr.f32.mxu0 0.0
        %561 = vmatmul.mubr.f32.gmra.mrb[0].mxu0 %v423
        %v562 = vpop.f32.mrb[0].mxu0
        %v563 = vadd.f32 0.0, %v562
        %v564 = vpop.f32.mrb[0].mxu0
        %565 = vdwg.mxu0
        %v566 = vld [vmem:[%s389] sm:$0xff]
        %v567 = vld [vmem:[%s389 + $0x8] sm:$0xf]
        %v570 = vcombine.high %v566, %v566
        %571 = vrot.lane.b32.xlu0 %v566, 19
        %v572 = vpop.permute.xlu0 %571
        %573 = vrot.lane.b32.xlu0 %v570, 19
        %v574 = vpop.permute.xlu0 %573
        %575 = vrot.lane.b32.xlu0 %v567, 19
        %v576 = vpop.permute.xlu0 %575
        %vm577 = vcmask 154624
        %v578 = vsel %vm577, %v572, %v574
        %v579 = vsel %vm577, %v574, %v576
        %vm584 = vcmask 1043608
        %585 = vst.msk [vmem:[#allocation2] sm:$0xf] %vm584, %v572
        %586 = vst [vmem:[#allocation2 + $0x8] sm:$0xf] %v578
        %587 = vst [vmem:[#allocation2 + $0x10] sm:$0xf] %v579
        %vm588 = vcmask 150528
        %589 = vst.msk [vmem:[#allocation2 + $0x18] sm:$0xf] %vm588, %v576
        %v593 = vrot.slane %v492, 4
        %v594 = vrot.slane %v494, 4
        %v595 = vrot.slane %v563, 4
        %596 = vrot.lane.b32.xlu0 %v593, 19
        %v597 = vpop.permute.xlu0 %596
        %598 = vrot.lane.b32.xlu0 %v594, 19
        %v599 = vpop.permute.xlu0 %598
        %600 = vrot.lane.b32.xlu0 %v595, 19
        %v601 = vpop.permute.xlu0 %600
        %v602 = vsel %vm577, %v597, %v599
        %v603 = vsel %vm577, %v599, %v601
        %vm608 = vcmask 1047708
        %609 = vst.msk [vmem:[#allocation2] sm:$0xf0] %vm608, %v597
        %610 = vst [vmem:[#allocation2 + $0x8] sm:$0xf0] %v602
        %611 = vst [vmem:[#allocation2 + $0x10] sm:$0xf0] %v603
        %vm612 = vcmask 154628
        %613 = vst.msk [vmem:[#allocation2 + $0x18] sm:$0xf0] %vm612, %v601
        %v614 = vld [vmem:[%s3] sm:$0xf]
        %v615 = vld [vmem:[%s4] sm:$0xf]
        %v616 = vld [vmem:[#allocation2] sm:$0xff]
        %v617 = vld [vmem:[#allocation2 + $0x8] sm:$0xff]
        %v618 = vld [vmem:[#allocation2 + $0x10] sm:$0xff]
        %619 = vst [vmem:[#allocation3] sm:$0xff] %v616
        %620 = vst [vmem:[#allocation3 + $0x8] sm:$0xff] %v617
        %621 = vst [vmem:[#allocation3 + $0x10] sm:$0xff] %v618
        %v622 = vld [vmem:[#allocation2] sm:$0xff]
        %v623 = vld [vmem:[#allocation2 + $0x8] sm:$0xff]
        %v624 = vld [vmem:[#allocation2 + $0x10] sm:$0xff]
        %v625 = vld [vmem:[#allocation2 + $0x18] sm:$0xff]
        %630 = vrot.lane.b32.xlu0 %v622, 127
        %v631 = vpop.permute.xlu0 %630
        %632 = vrot.lane.b32.xlu0 %v623, 127
        %v633 = vpop.permute.xlu0 %632
        %634 = vrot.lane.b32.xlu0 %v624, 127
        %v635 = vpop.permute.xlu0 %634
        %636 = vrot.lane.b32.xlu0 %v625, 127
        %v637 = vpop.permute.xlu0 %636
        %vm638 = vcmask 1039360
        %v639 = vsel %vm638, %v631, %v633
        %v640 = vsel %vm638, %v633, %v635
        %v641 = vsel %vm638, %v635, %v637
        %645 = vst [vmem:[#allocation3 + $0x18] sm:$0xff] %v639
        %646 = vst [vmem:[#allocation3 + $0x20] sm:$0xff] %v640
        %647 = vst [vmem:[#allocation3 + $0x28] sm:$0xff] %v641
        %v648 = vld [vmem:[#allocation2] sm:$0xff]
        %v649 = vld [vmem:[#allocation2 + $0x8] sm:$0xff]
        %v650 = vld [vmem:[#allocation2 + $0x10] sm:$0xff]
        %v651 = vld [vmem:[#allocation2 + $0x18] sm:$0xff]
        %656 = vrot.lane.b32.xlu0 %v648, 126
        %v657 = vpop.permute.xlu0 %656
        %658 = vrot.lane.b32.xlu0 %v649, 126
        %v659 = vpop.permute.xlu0 %658
        %660 = vrot.lane.b32.xlu0 %v650, 126
        %v661 = vpop.permute.xlu0 %660
        %662 = vrot.lane.b32.xlu0 %v651, 126
        %v663 = vpop.permute.xlu0 %662
        %vm664 = vcmask 1031168
        %v665 = vsel %vm664, %v657, %v659
        %v666 = vsel %vm664, %v659, %v661
        %v667 = vsel %vm664, %v661, %v663
        %671 = vst [vmem:[#allocation3 + $0x30] sm:$0xff] %v665
        %672 = vst [vmem:[#allocation3 + $0x38] sm:$0xff] %v666
        %673 = vst [vmem:[#allocation3 + $0x40] sm:$0xff] %v667
        %v674 = vld [vmem:[#allocation2] sm:$0xff]
        %v675 = vld [vmem:[#allocation2 + $0x8] sm:$0xff]
        %v676 = vld [vmem:[#allocation2 + $0x10] sm:$0xff]
        %v677 = vld [vmem:[#allocation2 + $0x18] sm:$0xff]
        %682 = vrot.lane.b32.xlu0 %v674, 110
        %v683 = vpop.permute.xlu0 %682
        %684 = vrot.lane.b32.xlu0 %v675, 110
        %v685 = vpop.permute.xlu0 %684
        %686 = vrot.lane.b32.xlu0 %v676, 110
        %v687 = vpop.permute.xlu0 %686
        %688 = vrot.lane.b32.xlu0 %v677, 110
        %v689 = vpop.permute.xlu0 %688
        %vm690 = vcmask 900096
        %v691 = vsel %vm690, %v683, %v685
        %v692 = vsel %vm690, %v685, %v687
        %v693 = vsel %vm690, %v687, %v689
        %697 = vst [vmem:[#allocation3 + $0x48] sm:$0xff] %v691
        %698 = vst [vmem:[#allocation3 + $0x50] sm:$0xff] %v692
        %699 = vst [vmem:[#allocation3 + $0x58] sm:$0xff] %v693
        %v700 = vld [vmem:[#allocation2] sm:$0xff]
        %v701 = vld [vmem:[#allocation2 + $0x8] sm:$0xff]
        %v702 = vld [vmem:[#allocation2 + $0x10] sm:$0xff]
        %v703 = vld [vmem:[#allocation2 + $0x18] sm:$0xff]
        %708 = vrot.lane.b32.xlu0 %v700, 109
        %v709 = vpop.permute.xlu0 %708
        %710 = vrot.lane.b32.xlu0 %v701, 109
        %v711 = vpop.permute.xlu0 %710
        %712 = vrot.lane.b32.xlu0 %v702, 109
        %v713 = vpop.permute.xlu0 %712
        %714 = vrot.lane.b32.xlu0 %v703, 109
        %v715 = vpop.permute.xlu0 %714
        %vm716 = vcmask 891904
        %v717 = vsel %vm716, %v709, %v711
        %v718 = vsel %vm716, %v711, %v713
        %v719 = vsel %vm716, %v713, %v715
        %723 = vst [vmem:[#allocation3 + $0x60] sm:$0xff] %v717
        %724 = vst [vmem:[#allocation3 + $0x68] sm:$0xff] %v718
        %725 = vst [vmem:[#allocation3 + $0x70] sm:$0xff] %v719
        %v726 = vld [vmem:[#allocation2] sm:$0xff]
        %v727 = vld [vmem:[#allocation2 + $0x8] sm:$0xff]
        %v728 = vld [vmem:[#allocation2 + $0x10] sm:$0xff]
        %v729 = vld [vmem:[#allocation2 + $0x18] sm:$0xff]
        %734 = vrot.lane.b32.xlu0 %v726, 108
        %v735 = vpop.permute.xlu0 %734
        %736 = vrot.lane.b32.xlu0 %v727, 108
        %v737 = vpop.permute.xlu0 %736
        %738 = vrot.lane.b32.xlu0 %v728, 108
        %v739 = vpop.permute.xlu0 %738
        %740 = vrot.lane.b32.xlu0 %v729, 108
        %v741 = vpop.permute.xlu0 %740
        %vm742 = vcmask 883712
        %v743 = vsel %vm742, %v735, %v737
        %v744 = vsel %vm742, %v737, %v739
        %v745 = vsel %vm742, %v739, %v741
        %749 = vst [vmem:[#allocation3 + $0x78] sm:$0xff] %v743
        %750 = vst [vmem:[#allocation3 + $0x80] sm:$0xff] %v744
        %751 = vst [vmem:[#allocation3 + $0x88] sm:$0xff] %v745
        %v752 = vld [vmem:[#allocation2] sm:$0xff]
        %v753 = vld [vmem:[#allocation2 + $0x8] sm:$0xff]
        %v754 = vld [vmem:[#allocation2 + $0x10] sm:$0xff]
        %v755 = vld [vmem:[#allocation2 + $0x18] sm:$0xff]
        %760 = vrot.lane.b32.xlu0 %v752, 92
        %v761 = vpop.permute.xlu0 %760
        %762 = vrot.lane.b32.xlu0 %v753, 92
        %v763 = vpop.permute.xlu0 %762
        %764 = vrot.lane.b32.xlu0 %v754, 92
        %v765 = vpop.permute.xlu0 %764
        %766 = vrot.lane.b32.xlu0 %v755, 92
        %v767 = vpop.permute.xlu0 %766
        %vm768 = vcmask 752640
        %v769 = vsel %vm768, %v761, %v763
        %v770 = vsel %vm768, %v763, %v765
        %v771 = vsel %vm768, %v765, %v767
        %775 = vst [vmem:[#allocation3 + $0x90] sm:$0xff] %v769
        %776 = vst [vmem:[#allocation3 + $0x98] sm:$0xff] %v770
        %777 = vst [vmem:[#allocation3 + $0xa0] sm:$0xff] %v771
        %v778 = vld [vmem:[#allocation2] sm:$0xff]
        %v779 = vld [vmem:[#allocation2 + $0x8] sm:$0xff]
        %v780 = vld [vmem:[#allocation2 + $0x10] sm:$0xff]
        %v781 = vld [vmem:[#allocation2 + $0x18] sm:$0xff]
        %786 = vrot.lane.b32.xlu0 %v778, 91
        %v787 = vpop.permute.xlu0 %786
        %788 = vrot.lane.b32.xlu0 %v779, 91
        %v789 = vpop.permute.xlu0 %788
        %790 = vrot.lane.b32.xlu0 %v780, 91
        %v791 = vpop.permute.xlu0 %790
        %792 = vrot.lane.b32.xlu0 %v781, 91
        %v793 = vpop.permute.xlu0 %792
        %vm794 = vcmask 744448
        %v795 = vsel %vm794, %v787, %v789
        %v796 = vsel %vm794, %v789, %v791
        %v797 = vsel %vm794, %v791, %v793
        %801 = vst [vmem:[#allocation3 + $0xa8] sm:$0xff] %v795
        %802 = vst [vmem:[#allocation3 + $0xb0] sm:$0xff] %v796
        %803 = vst [vmem:[#allocation3 + $0xb8] sm:$0xff] %v797
        %v804 = vld [vmem:[#allocation2] sm:$0xff]
        %v805 = vld [vmem:[#allocation2 + $0x8] sm:$0xff]
        %v806 = vld [vmem:[#allocation2 + $0x10] sm:$0xff]
        %v807 = vld [vmem:[#allocation2 + $0x18] sm:$0xff]
        %812 = vrot.lane.b32.xlu0 %v804, 90
        %v813 = vpop.permute.xlu0 %812
        %814 = vrot.lane.b32.xlu0 %v805, 90
        %v815 = vpop.permute.xlu0 %814
        %816 = vrot.lane.b32.xlu0 %v806, 90
        %v817 = vpop.permute.xlu0 %816
        %818 = vrot.lane.b32.xlu0 %v807, 90
        %v819 = vpop.permute.xlu0 %818
        %vm820 = vcmask 736256
        %v821 = vsel %vm820, %v813, %v815
        %v822 = vsel %vm820, %v815, %v817
        %v823 = vsel %vm820, %v817, %v819
        %827 = vst [vmem:[#allocation3 + $0xc0] sm:$0xff] %v821
        %828 = vst [vmem:[#allocation3 + $0xc8] sm:$0xff] %v822
        %829 = vst [vmem:[#allocation3 + $0xd0] sm:$0xff] %v823
        %v830 = vld [vmem:[#allocation3] sm:$0xff]
        %v831 = vld [vmem:[#allocation3 + $0x8] sm:$0xff]
        %v832 = vld [vmem:[#allocation3 + $0x10] sm:$0xff]
        %v833 = vld [vmem:[#allocation3 + $0x18] sm:$0xff]
        %v834 = vld [vmem:[#allocation3 + $0x20] sm:$0xff]
        %v835 = vld [vmem:[#allocation3 + $0x28] sm:$0xff]
        %v836 = vld [vmem:[#allocation3 + $0x30] sm:$0xff]
        %v837 = vld [vmem:[#allocation3 + $0x38] sm:$0xff]
        %v838 = vld [vmem:[#allocation3 + $0x40] sm:$0xff]
        %v839 = vld [vmem:[#allocation3 + $0x48] sm:$0xff]
        %v840 = vld [vmem:[#allocation3 + $0x50] sm:$0xff]
        %v841 = vld [vmem:[#allocation3 + $0x58] sm:$0xff]
        %v842 = vld [vmem:[#allocation3 + $0x60] sm:$0xff]
        %v843 = vld [vmem:[#allocation3 + $0x68] sm:$0xff]
        %v844 = vld [vmem:[#allocation3 + $0x70] sm:$0xff]
        %v845 = vld [vmem:[#allocation3 + $0x78] sm:$0xff]
        %v846 = vld [vmem:[#allocation3 + $0x80] sm:$0xff]
        %v847 = vld [vmem:[#allocation3 + $0x88] sm:$0xff]
        %v848 = vld [vmem:[#allocation3 + $0x90] sm:$0xff]
        %v849 = vld [vmem:[#allocation3 + $0x98] sm:$0xff]
        %v850 = vld [vmem:[#allocation3 + $0xa0] sm:$0xff]
        %v851 = vld [vmem:[#allocation3 + $0xa8] sm:$0xff]
        %v852 = vld [vmem:[#allocation3 + $0xb0] sm:$0xff]
        %v853 = vld [vmem:[#allocation3 + $0xb8] sm:$0xff]
        %v854 = vld [vmem:[#allocation3 + $0xc0] sm:$0xff]
        %v855 = vld [vmem:[#allocation3 + $0xc8] sm:$0xff]
        %v856 = vld [vmem:[#allocation3 + $0xd0] sm:$0xff]
        %858 = vset.pattern.permute.xlu0 0
        %859 = vperm.xlu0 %858, %v615
        %v860 = vpop.permute.xlu0 %859
        %vm862 = vcmask 588800
        %v864 = vsel %vm862, %v614, 0
        %866 = vmatprep.subr.mxu0 %v831
        %867 = vmatpush1.msra.mxu0 %v830
        %868 = vmatprep.subr.mxu0 %v834
        %869 = vmatpush1.msra.mxu0 %v833
        %870 = vmatprep.subr.mxu0 %v837
        %871 = vmatpush1.msra.mxu0 %v836
        %872 = vmatprep.subr.mxu0 %v840
        %873 = vmatpush1.msra.mxu0 %v839
        %874 = vmatprep.subr.mxu0 %v843
        %875 = vmatpush1.msra.mxu0 %v842
        %876 = vmatprep.subr.mxu0 %v846
        %877 = vmatpush1.msra.mxu0 %v845
        %878 = vmatprep.subr.mxu0 %v849
        %879 = vmatpush1.msra.mxu0 %v848
        %880 = vmatprep.subr.mxu0 %v852
        %881 = vmatpush1.msra.mxu0 %v851
        %882 = vmatprep.subr.mxu0 %v855
        %883 = vmatpush1.msra.mxu0 %v854
        %884 = vmatprep.subr.mxu0 0.0
        %885 = vmatpush1.msra.mxu0 0.0
        %886 = vmatprep.subr.mxu0 0.0
        %887 = vmatpush1.msra.mxu0 0.0
        %888 = vmatprep.subr.mxu0 0.0
        %889 = vmatpush1.msra.mxu0 0.0
        %890 = vmatprep.subr.mxu0 0.0
        %891 = vmatpush1.msra.mxu0 0.0
        %892 = vmatprep.subr.mxu0 0.0
        %893 = vmatpush1.msra.mxu0 0.0
        %894 = vmatprep.subr.mxu0 0.0
        %895 = vmatpush1.msra.mxu0 0.0
        %896 = vmatprep.subr.mxu0 0.0
        %897 = vmatpush1.msra.mxu0 0.0
        %898 = vmatprep.subr.mxu0 0.0
        %899 = vmatpush1.msra.mxu0 0.0
        %900 = vmatprep.subr.mxu0 0.0
        %901 = vmatpush1.msra.mxu0 0.0
        %902 = vmatprep.subr.mxu0 0.0
        %903 = vmatpush1.msra.mxu0 0.0
        %904 = vmatprep.subr.mxu0 0.0
        %905 = vmatpush1.msra.mxu0 0.0
        %906 = vmatprep.subr.mxu0 0.0
        %907 = vmatpush1.msra.mxu0 0.0
        %908 = vmatprep.subr.mxu0 0.0
        %909 = vmatpush1.msra.mxu0 0.0
        %910 = vmatprep.subr.mxu0 0.0
        %911 = vmatpush1.msra.mxu0 0.0
        %912 = vmatprep.subr.mxu0 0.0
        %913 = vmatpush1.msra.mxu0 0.0
        %914 = vmatprep.subr.mxu0 0.0
        %915 = vmatpush1.msra.mxu0 0.0
        %916 = vmatprep.subr.mxu0 0.0
        %917 = vmatpush1.msra.mxu0 0.0
        %918 = vmatprep.subr.mxu0 0.0
        %919 = vmatpush1.msra.mxu0 0.0
        %920 = vmatprep.subr.mxu0 0.0
        %921 = vmatpush1.msra.mxu0 0.0
        %922 = vmatprep.subr.mxu0 0.0
        %923 = vmatpush1.msra.mxu0 0.0
        %924 = vmatprep.subr.mxu0 0.0
        %925 = vmatpush1.msra.mxu0 0.0
        %926 = vmatprep.subr.mxu0 0.0
        %927 = vmatpush1.msra.mxu0 0.0
        %928 = vmatprep.subr.mxu0 0.0
        %929 = vmatpush1.msra.mxu0 0.0
        %930 = vmatprep.mubr.f32.mxu0 0.0
        %931 = vmatmul.mubr.f32.gmra.mrb[0].mxu0 %v864
        %v932 = vpop.f32.mrb[0].mxu0
        %v933 = vadd.f32 %v860, %v932
        %v934 = vpop.f32.mrb[0].mxu0
        %v935 = vadd.f32 %v860, %v934
        %936 = vdwg.mxu0
        %937 = vmatprep.subr.mxu0 0.0
        %938 = vmatpush1.msra.mxu0 %v832
        %939 = vmatprep.subr.mxu0 0.0
        %940 = vmatpush1.msra.mxu0 %v835
        %941 = vmatprep.subr.mxu0 0.0
        %942 = vmatpush1.msra.mxu0 %v838
        %943 = vmatprep.subr.mxu0 0.0
        %944 = vmatpush1.msra.mxu0 %v841
        %945 = vmatprep.subr.mxu0 0.0
        %946 = vmatpush1.msra.mxu0 %v844
        %947 = vmatprep.subr.mxu0 0.0
        %948 = vmatpush1.msra.mxu0 %v847
        %949 = vmatprep.subr.mxu0 0.0
        %950 = vmatpush1.msra.mxu0 %v850
        %951 = vmatprep.subr.mxu0 0.0
        %952 = vmatpush1.msra.mxu0 %v853
        %953 = vmatprep.subr.mxu0 0.0
        %954 = vmatpush1.msra.mxu0 %v856
        %955 = vmatprep.subr.mxu0 0.0
        %956 = vmatpush1.msra.mxu0 0.0
        %957 = vmatprep.subr.mxu0 0.0
        %958 = vmatpush1.msra.mxu0 0.0
        %959 = vmatprep.subr.mxu0 0.0
        %960 = vmatpush1.msra.mxu0 0.0
        %961 = vmatprep.subr.mxu0 0.0
        %962 = vmatpush1.msra.mxu0 0.0
        %963 = vmatprep.subr.mxu0 0.0
        %964 = vmatpush1.msra.mxu0 0.0
        %965 = vmatprep.subr.mxu0 0.0
        %966 = vmatpush1.msra.mxu0 0.0
        %967 = vmatprep.subr.mxu0 0.0
        %968 = vmatpush1.msra.mxu0 0.0
        %969 = vmatprep.subr.mxu0 0.0
        %970 = vmatpush1.msra.mxu0 0.0
        %971 = vmatprep.subr.mxu0 0.0
        %972 = vmatpush1.msra.mxu0 0.0
        %973 = vmatprep.subr.mxu0 0.0
        %974 = vmatpush1.msra.mxu0 0.0
        %975 = vmatprep.subr.mxu0 0.0
        %976 = vmatpush1.msra.mxu0 0.0
        %977 = vmatprep.subr.mxu0 0.0
        %978 = vmatpush1.msra.mxu0 0.0
        %979 = vmatprep.subr.mxu0 0.0
        %980 = vmatpush1.msra.mxu0 0.0
        %981 = vmatprep.subr.mxu0 0.0
        %982 = vmatpush1.msra.mxu0 0.0
        %983 = vmatprep.subr.mxu0 0.0
        %984 = vmatpush1.msra.mxu0 0.0
        %985 = vmatprep.subr.mxu0 0.0
        %986 = vmatpush1.msra.mxu0 0.0
        %987 = vmatprep.subr.mxu0 0.0
        %988 = vmatpush1.msra.mxu0 0.0
        %989 = vmatprep.subr.mxu0 0.0
        %990 = vmatpush1.msra.mxu0 0.0
        %991 = vmatprep.subr.mxu0 0.0
        %992 = vmatpush1.msra.mxu0 0.0
        %993 = vmatprep.subr.mxu0 0.0
        %994 = vmatpush1.msra.mxu0 0.0
        %995 = vmatprep.subr.mxu0 0.0
        %996 = vmatpush1.msra.mxu0 0.0
        %997 = vmatprep.subr.mxu0 0.0
        %998 = vmatpush1.msra.mxu0 0.0
        %999 = vmatprep.subr.mxu0 0.0
        %1000 = vmatpush1.msra.mxu0 0.0
        %1001 = vmatprep.mubr.f32.mxu0 0.0
        %1002 = vmatmul.mubr.f32.gmra.mrb[0].mxu0 %v864
        %v1003 = vpop.f32.mrb[0].mxu0
        %v1004 = vadd.f32 %v860, %v1003
        %v1005 = vpop.f32.mrb[0].mxu0
        %1006 = vdwg.mxu0
        %v1008 = vlaneseq
        %v1009 = vshrl.u32 %v1008, 7
        %v1010 = vsub.s32 0, %v1009
        %v1011 = vrot.slane %v390, %v1010
        %v1012 = vlaneseq
        %v1013 = vshrl.u32 %v1012, 7
        %v1014 = vsub.s32 1, %v1013
        %v1015 = vrot.slane %v390, %v1014
        %v1016 = vlaneseq
        %v1017 = vshrl.u32 %v1016, 7
        %v1018 = vsub.s32 2, %v1017
        %v1019 = vrot.slane %v390, %v1018
        %v1023 = vmul.f32 %v933, %v1011
        %v1024 = vmul.f32 %v935, %v1015
        %v1025 = vmul.f32 %v1004, %v1019
        %v1026 = vmax.f32 %v1023, 0.0
        %v1027 = vmax.f32 %v1024, 0.0
        %v1028 = vmax.f32 %v1025, 0.0
        %v1029 = vand.u32 2147483647, %v1023
        %v1030 = vand.u32 2147483647, %v1024
        %v1031 = vand.u32 2147483647, %v1025
        %v1032 = vsub.f32 0.0, %v1029
        %v1033 = vsub.f32 0.0, %v1030
        %v1034 = vsub.f32 0.0, %v1031
        %v1035 = vmul.f32 %v1032, 1.442695
        %v1036 = vpow.pop %v1035
        %v1037 = vmul.f32 %v1033, 1.442695
        %v1038 = vpow.pop %v1037
        %v1039 = vmul.f32 %v1034, 1.442695
        %v1040 = vpow.pop %v1039
        %v1041 = vadd.f32 %v1036, 1.0
        %v1042 = vlog2.pop %v1041
        %v1043 = vmul.f32 %v1042, 0.6931472
        %v1044 = vmul.f32 -0.5, %v1036
        %v1045 = vadd.f32 %v1044, 1.0
        %v1046 = vmul.f32 %v1045, %v1036
        %v1047 = vand.u32 2147483647, %v1036
        %vm1048 = vcmp.lt.f32.partialorder %v1047, 0.0004427343
        %v1049 = vsel %vm1048, %v1046, %v1043
        %v1050 = vadd.f32 %v1038, 1.0
        %v1051 = vlog2.pop %v1050
        %v1052 = vmul.f32 %v1051, 0.6931472
        %v1053 = vmul.f32 -0.5, %v1038
        %v1054 = vadd.f32 %v1053, 1.0
        %v1055 = vmul.f32 %v1054, %v1038
        %v1056 = vand.u32 2147483647, %v1038
        %vm1057 = vcmp.lt.f32.partialorder %v1056, 0.0004427343
        %v1058 = vsel %vm1057, %v1055, %v1052
        %v1059 = vadd.f32 %v1040, 1.0
        %v1060 = vlog2.pop %v1059
        %v1061 = vmul.f32 %v1060, 0.6931472
        %v1062 = vmul.f32 -0.5, %v1040
        %v1063 = vadd.f32 %v1062, 1.0
        %v1064 = vmul.f32 %v1063, %v1040
        %v1065 = vand.u32 2147483647, %v1040
        %vm1066 = vcmp.lt.f32.partialorder %v1065, 0.0004427343
        %v1067 = vsel %vm1066, %v1064, %v1061
        %v1068 = vadd.f32 %v1026, %v1049
        %v1069 = vadd.f32 %v1027, %v1058
        %v1070 = vadd.f32 %v1028, %v1067
        %v1071 = vtanh.pop %v1068
        %v1072 = vtanh.pop %v1069
        %v1073 = vtanh.pop %v1070
        %v1074 = vmul.f32 %v1023, %v1071
        %v1075 = vmul.f32 %v1024, %v1072
        %v1076 = vmul.f32 %v1025, %v1073
        %1080 = vrot.lane.b32.xlu0 %v1074, 19
        %v1081 = vpop.permute.xlu0 %1080
        %1082 = vrot.lane.b32.xlu0 %v1075, 19
        %v1083 = vpop.permute.xlu0 %1082
        %1084 = vrot.lane.b32.xlu0 %v1076, 19
        %v1085 = vpop.permute.xlu0 %1084
        %v1086 = vsel %vm577, %v1081, %v1083
        %v1087 = vsel %vm577, %v1083, %v1085
        %1092 = vst.msk [vmem:[#allocation2] sm:$0xf] %vm584, %v1081
        %1093 = vst [vmem:[#allocation2 + $0x8] sm:$0xf] %v1086
        %1094 = vst [vmem:[#allocation2 + $0x10] sm:$0xf] %v1087
        %1095 = vst.msk [vmem:[#allocation2 + $0x18] sm:$0xf] %vm588, %v1085
        %v1096 = vld [vmem:[%s5] sm:$0xf]
        %v1097 = vld [vmem:[%s6] sm:$0xf]
        %v1098 = vld [vmem:[#allocation2] sm:$0xf]
        %v1099 = vld [vmem:[#allocation2 + $0x8] sm:$0xf]
        %v1100 = vld [vmem:[#allocation2 + $0x10] sm:$0xf]
        %1101 = vst [vmem:[#allocation3] sm:$0xf] %v1098
        %1102 = vst [vmem:[#allocation3 + $0x8] sm:$0xf] %v1099
        %1103 = vst [vmem:[#allocation3 + $0x10] sm:$0xf] %v1100
        %v1104 = vld [vmem:[#allocation2] sm:$0xf]
        %v1105 = vld [vmem:[#allocation2 + $0x8] sm:$0xf]
        %v1106 = vld [vmem:[#allocation2 + $0x10] sm:$0xf]
        %v1107 = vld [vmem:[#allocation2 + $0x18] sm:$0xf]
        %v1112 = vrot.slane %v1104, 4
        %v1113 = vrot.slane %v1105, 4
        %v1114 = vrot.slane %v1106, 4
        %v1115 = vrot.slane %v1107, 4
        %1116 = vrot.lane.b32.xlu0 %v1112, 127
        %v1117 = vpop.permute.xlu0 %1116
        %1118 = vrot.lane.b32.xlu0 %v1113, 127
        %v1119 = vpop.permute.xlu0 %1118
        %1120 = vrot.lane.b32.xlu0 %v1114, 127
        %v1121 = vpop.permute.xlu0 %1120
        %1122 = vrot.lane.b32.xlu0 %v1115, 127
        %v1123 = vpop.permute.xlu0 %1122
        %v1124 = vsel %vm638, %v1117, %v1119
        %v1125 = vsel %vm638, %v1119, %v1121
        %v1126 = vsel %vm638, %v1121, %v1123
        %1130 = vst [vmem:[#allocation3] sm:$0xf0] %v1124
        %1131 = vst [vmem:[#allocation3 + $0x8] sm:$0xf0] %v1125
        %1132 = vst [vmem:[#allocation3 + $0x10] sm:$0xf0] %v1126
        %v1133 = vld [vmem:[#allocation2] sm:$0xf]
        %v1134 = vld [vmem:[#allocation2 + $0x8] sm:$0xf]
        %v1135 = vld [vmem:[#allocation2 + $0x10] sm:$0xf]
        %v1136 = vld [vmem:[#allocation2 + $0x18] sm:$0xf]
        %1141 = vrot.lane.b32.xlu0 %v1133, 126
        %v1142 = vpop.permute.xlu0 %1141
        %1143 = vrot.lane.b32.xlu0 %v1134, 126
        %v1144 = vpop.permute.xlu0 %1143
        %1145 = vrot.lane.b32.xlu0 %v1135, 126
        %v1146 = vpop.permute.xlu0 %1145
        %1147 = vrot.lane.b32.xlu0 %v1136, 126
        %v1148 = vpop.permute.xlu0 %1147
        %v1149 = vsel %vm664, %v1142, %v1144
        %v1150 = vsel %vm664, %v1144, %v1146
        %v1151 = vsel %vm664, %v1146, %v1148
        %1155 = vst [vmem:[#allocation3 + $0x18] sm:$0xf] %v1149
        %1156 = vst [vmem:[#allocation3 + $0x20] sm:$0xf] %v1150
        %1157 = vst [vmem:[#allocation3 + $0x28] sm:$0xf] %v1151
        %v1158 = vld [vmem:[#allocation2] sm:$0xf]
        %v1159 = vld [vmem:[#allocation2 + $0x8] sm:$0xf]
        %v1160 = vld [vmem:[#allocation2 + $0x10] sm:$0xf]
        %v1161 = vld [vmem:[#allocation2 + $0x18] sm:$0xf]
        %v1166 = vrot.slane %v1158, 4
        %v1167 = vrot.slane %v1159, 4
        %v1168 = vrot.slane %v1160, 4
        %v1169 = vrot.slane %v1161, 4
        %1170 = vrot.lane.b32.xlu0 %v1166, 110
        %v1171 = vpop.permute.xlu0 %1170
        %1172 = vrot.lane.b32.xlu0 %v1167, 110
        %v1173 = vpop.permute.xlu0 %1172
        %1174 = vrot.lane.b32.xlu0 %v1168, 110
        %v1175 = vpop.permute.xlu0 %1174
        %1176 = vrot.lane.b32.xlu0 %v1169, 110
        %v1177 = vpop.permute.xlu0 %1176
        %v1178 = vsel %vm690, %v1171, %v1173
        %v1179 = vsel %vm690, %v1173, %v1175
        %v1180 = vsel %vm690, %v1175, %v1177
        %1184 = vst [vmem:[#allocation3 + $0x18] sm:$0xf0] %v1178
        %1185 = vst [vmem:[#allocation3 + $0x20] sm:$0xf0] %v1179
        %1186 = vst [vmem:[#allocation3 + $0x28] sm:$0xf0] %v1180
        %v1187 = vld [vmem:[#allocation2] sm:$0xf]
        %v1188 = vld [vmem:[#allocation2 + $0x8] sm:$0xf]
        %v1189 = vld [vmem:[#allocation2 + $0x10] sm:$0xf]
        %v1190 = vld [vmem:[#allocation2 + $0x18] sm:$0xf]
        %1195 = vrot.lane.b32.xlu0 %v1187, 109
        %v1196 = vpop.permute.xlu0 %1195
        %1197 = vrot.lane.b32.xlu0 %v1188, 109
        %v1198 = vpop.permute.xlu0 %1197
        %1199 = vrot.lane.b32.xlu0 %v1189, 109
        %v1200 = vpop.permute.xlu0 %1199
        %1201 = vrot.lane.b32.xlu0 %v1190, 109
        %v1202 = vpop.permute.xlu0 %1201
        %v1203 = vsel %vm716, %v1196, %v1198
        %v1204 = vsel %vm716, %v1198, %v1200
        %v1205 = vsel %vm716, %v1200, %v1202
        %1209 = vst [vmem:[#allocation3 + $0x30] sm:$0xf] %v1203
        %1210 = vst [vmem:[#allocation3 + $0x38] sm:$0xf] %v1204
        %1211 = vst [vmem:[#allocation3 + $0x40] sm:$0xf] %v1205
        %v1212 = vld [vmem:[#allocation2] sm:$0xf]
        %v1213 = vld [vmem:[#allocation2 + $0x8] sm:$0xf]
        %v1214 = vld [vmem:[#allocation2 + $0x10] sm:$0xf]
        %v1215 = vld [vmem:[#allocation2 + $0x18] sm:$0xf]
        %v1220 = vrot.slane %v1212, 4
        %v1221 = vrot.slane %v1213, 4
        %v1222 = vrot.slane %v1214, 4
        %v1223 = vrot.slane %v1215, 4
        %1224 = vrot.lane.b32.xlu0 %v1220, 108
        %v1225 = vpop.permute.xlu0 %1224
        %1226 = vrot.lane.b32.xlu0 %v1221, 108
        %v1227 = vpop.permute.xlu0 %1226
        %1228 = vrot.lane.b32.xlu0 %v1222, 108
        %v1229 = vpop.permute.xlu0 %1228
        %1230 = vrot.lane.b32.xlu0 %v1223, 108
        %v1231 = vpop.permute.xlu0 %1230
        %v1232 = vsel %vm742, %v1225, %v1227
        %v1233 = vsel %vm742, %v1227, %v1229
        %v1234 = vsel %vm742, %v1229, %v1231
        %1238 = vst [vmem:[#allocation3 + $0x30] sm:$0xf0] %v1232
        %1239 = vst [vmem:[#allocation3 + $0x38] sm:$0xf0] %v1233
        %1240 = vst [vmem:[#allocation3 + $0x40] sm:$0xf0] %v1234
        %v1241 = vld [vmem:[#allocation2] sm:$0xf]
        %v1242 = vld [vmem:[#allocation2 + $0x8] sm:$0xf]
        %v1243 = vld [vmem:[#allocation2 + $0x10] sm:$0xf]
        %v1244 = vld [vmem:[#allocation2 + $0x18] sm:$0xf]
        %1249 = vrot.lane.b32.xlu0 %v1241, 92
        %v1250 = vpop.permute.xlu0 %1249
        %1251 = vrot.lane.b32.xlu0 %v1242, 92
        %v1252 = vpop.permute.xlu0 %1251
        %1253 = vrot.lane.b32.xlu0 %v1243, 92
        %v1254 = vpop.permute.xlu0 %1253
        %1255 = vrot.lane.b32.xlu0 %v1244, 92
        %v1256 = vpop.permute.xlu0 %1255
        %v1257 = vsel %vm768, %v1250, %v1252
        %v1258 = vsel %vm768, %v1252, %v1254
        %v1259 = vsel %vm768, %v1254, %v1256
        %1263 = vst [vmem:[#allocation3 + $0x48] sm:$0xf] %v1257
        %1264 = vst [vmem:[#allocation3 + $0x50] sm:$0xf] %v1258
        %1265 = vst [vmem:[#allocation3 + $0x58] sm:$0xf] %v1259
        %v1266 = vld [vmem:[#allocation2] sm:$0xf]
        %v1267 = vld [vmem:[#allocation2 + $0x8] sm:$0xf]
        %v1268 = vld [vmem:[#allocation2 + $0x10] sm:$0xf]
        %v1269 = vld [vmem:[#allocation2 + $0x18] sm:$0xf]
        %v1274 = vrot.slane %v1266, 4
        %v1275 = vrot.slane %v1267, 4
        %v1276 = vrot.slane %v1268, 4
        %v1277 = vrot.slane %v1269, 4
        %1278 = vrot.lane.b32.xlu0 %v1274, 91
        %v1279 = vpop.permute.xlu0 %1278
        %1280 = vrot.lane.b32.xlu0 %v1275, 91
        %v1281 = vpop.permute.xlu0 %1280
        %1282 = vrot.lane.b32.xlu0 %v1276, 91
        %v1283 = vpop.permute.xlu0 %1282
        %1284 = vrot.lane.b32.xlu0 %v1277, 91
        %v1285 = vpop.permute.xlu0 %1284
        %v1286 = vsel %vm794, %v1279, %v1281
        %v1287 = vsel %vm794, %v1281, %v1283
        %v1288 = vsel %vm794, %v1283, %v1285
        %1292 = vst [vmem:[#allocation3 + $0x48] sm:$0xf0] %v1286
        %1293 = vst [vmem:[#allocation3 + $0x50] sm:$0xf0] %v1287
        %1294 = vst [vmem:[#allocation3 + $0x58] sm:$0xf0] %v1288
        %v1295 = vld [vmem:[#allocation2] sm:$0xf]
        %v1296 = vld [vmem:[#allocation2 + $0x8] sm:$0xf]
        %v1297 = vld [vmem:[#allocation2 + $0x10] sm:$0xf]
        %v1298 = vld [vmem:[#allocation2 + $0x18] sm:$0xf]
        %1303 = vrot.lane.b32.xlu0 %v1295, 90
        %v1304 = vpop.permute.xlu0 %1303
        %1305 = vrot.lane.b32.xlu0 %v1296, 90
        %v1306 = vpop.permute.xlu0 %1305
        %1307 = vrot.lane.b32.xlu0 %v1297, 90
        %v1308 = vpop.permute.xlu0 %1307
        %1309 = vrot.lane.b32.xlu0 %v1298, 90
        %v1310 = vpop.permute.xlu0 %1309
        %v1311 = vsel %vm820, %v1304, %v1306
        %v1312 = vsel %vm820, %v1306, %v1308
        %v1313 = vsel %vm820, %v1308, %v1310
        %1317 = vst [vmem:[#allocation3 + $0x60] sm:$0xf] %v1311
        %1318 = vst [vmem:[#allocation3 + $0x68] sm:$0xf] %v1312
        %1319 = vst [vmem:[#allocation3 + $0x70] sm:$0xf] %v1313
        %v1320 = vld [vmem:[#allocation3] sm:$0xff]
        %v1321 = vld [vmem:[#allocation3 + $0x8] sm:$0xff]
        %v1322 = vld [vmem:[#allocation3 + $0x10] sm:$0xff]
        %v1323 = vld [vmem:[#allocation3 + $0x18] sm:$0xff]
        %v1324 = vld [vmem:[#allocation3 + $0x20] sm:$0xff]
        %v1325 = vld [vmem:[#allocation3 + $0x28] sm:$0xff]
        %v1326 = vld [vmem:[#allocation3 + $0x30] sm:$0xff]
        %v1327 = vld [vmem:[#allocation3 + $0x38] sm:$0xff]
        %v1328 = vld [vmem:[#allocation3 + $0x40] sm:$0xff]
        %v1329 = vld [vmem:[#allocation3 + $0x48] sm:$0xff]
        %v1330 = vld [vmem:[#allocation3 + $0x50] sm:$0xff]
        %v1331 = vld [vmem:[#allocation3 + $0x58] sm:$0xff]
        %v1332 = vld [vmem:[#allocation3 + $0x60] sm:$0xf]
        %v1333 = vld [vmem:[#allocation3 + $0x68] sm:$0xf]
        %v1334 = vld [vmem:[#allocation3 + $0x70] sm:$0xf]
        %1336 = vset.pattern.permute.xlu0 0
        %1337 = vperm.xlu0 %1336, %v1097
        %v1338 = vpop.permute.xlu0 %1337
        %vm1340 = vcmask 293888
        %v1342 = vsel %vm1340, %v1096, 0
        %vm1344 = vcmask 1043456
        %v1346 = vsel %vm1344, %v1332, 0
        %v1349 = vsel %vm1344, %v1333, 0
        %v1352 = vsel %vm1344, %v1334, 0
        %1354 = vmatprep.subr.mxu0 %v1321
        %1355 = vmatpush1.msra.mxu0 %v1320
        %1356 = vmatprep.subr.mxu0 %v1324
        %1357 = vmatpush1.msra.mxu0 %v1323
        %1358 = vmatprep.subr.mxu0 %v1327
        %1359 = vmatpush1.msra.mxu0 %v1326
        %1360 = vmatprep.subr.mxu0 %v1330
        %1361 = vmatpush1.msra.mxu0 %v1329
        %1362 = vmatprep.subr.mxu0 %v1349
        %1363 = vmatpush1.msra.mxu0 %v1346
        %1364 = vmatprep.subr.mxu0 0.0
        %1365 = vmatpush1.msra.mxu0 0.0
        %1366 = vmatprep.subr.mxu0 0.0
        %1367 = vmatpush1.msra.mxu0 0.0
        %1368 = vmatprep.subr.mxu0 0.0
        %1369 = vmatpush1.msra.mxu0 0.0
        %1370 = vmatprep.subr.mxu0 0.0
        %1371 = vmatpush1.msra.mxu0 0.0
        %1372 = vmatprep.subr.mxu0 0.0
        %1373 = vmatpush1.msra.mxu0 0.0
        %1374 = vmatprep.subr.mxu0 0.0
        %1375 = vmatpush1.msra.mxu0 0.0
        %1376 = vmatprep.subr.mxu0 0.0
        %1377 = vmatpush1.msra.mxu0 0.0
        %1378 = vmatprep.subr.mxu0 0.0
        %1379 = vmatpush1.msra.mxu0 0.0
        %1380 = vmatprep.subr.mxu0 0.0
        %1381 = vmatpush1.msra.mxu0 0.0
        %1382 = vmatprep.subr.mxu0 0.0
        %1383 = vmatpush1.msra.mxu0 0.0
        %1384 = vmatprep.subr.mxu0 0.0
        %1385 = vmatpush1.msra.mxu0 0.0
        %1386 = vmatprep.subr.mxu0 0.0
        %1387 = vmatpush1.msra.mxu0 0.0
        %1388 = vmatprep.subr.mxu0 0.0
        %1389 = vmatpush1.msra.mxu0 0.0
        %1390 = vmatprep.subr.mxu0 0.0
        %1391 = vmatpush1.msra.mxu0 0.0
        %1392 = vmatprep.subr.mxu0 0.0
        %1393 = vmatpush1.msra.mxu0 0.0
        %1394 = vmatprep.subr.mxu0 0.0
        %1395 = vmatpush1.msra.mxu0 0.0
        %1396 = vmatprep.subr.mxu0 0.0
        %1397 = vmatpush1.msra.mxu0 0.0
        %1398 = vmatprep.subr.mxu0 0.0
        %1399 = vmatpush1.msra.mxu0 0.0
        %1400 = vmatprep.subr.mxu0 0.0
        %1401 = vmatpush1.msra.mxu0 0.0
        %1402 = vmatprep.subr.mxu0 0.0
        %1403 = vmatpush1.msra.mxu0 0.0
        %1404 = vmatprep.subr.mxu0 0.0
        %1405 = vmatpush1.msra.mxu0 0.0
        %1406 = vmatprep.subr.mxu0 0.0
        %1407 = vmatpush1.msra.mxu0 0.0
        %1408 = vmatprep.subr.mxu0 0.0
        %1409 = vmatpush1.msra.mxu0 0.0
        %1410 = vmatprep.subr.mxu0 0.0
        %1411 = vmatpush1.msra.mxu0 0.0
        %1412 = vmatprep.subr.mxu0 0.0
        %1413 = vmatpush1.msra.mxu0 0.0
        %1414 = vmatprep.subr.mxu0 0.0
        %1415 = vmatpush1.msra.mxu0 0.0
        %1416 = vmatprep.subr.mxu0 0.0
        %1417 = vmatpush1.msra.mxu0 0.0
        %1418 = vmatprep.mubr.f32.mxu0 0.0
        %1419 = vmatmul.mubr.f32.gmra.mrb[0].mxu0 %v1342
        %v1420 = vpop.f32.mrb[0].mxu0
        %v1421 = vadd.f32 %v1338, %v1420
        %v1422 = vpop.f32.mrb[0].mxu0
        %v1423 = vadd.f32 %v1338, %v1422
        %1424 = vdwg.mxu0
        %1425 = vmatprep.subr.mxu0 0.0
        %1426 = vmatpush1.msra.mxu0 %v1322
        %1427 = vmatprep.subr.mxu0 0.0
        %1428 = vmatpush1.msra.mxu0 %v1325
        %1429 = vmatprep.subr.mxu0 0.0
        %1430 = vmatpush1.msra.mxu0 %v1328
        %1431 = vmatprep.subr.mxu0 0.0
        %1432 = vmatpush1.msra.mxu0 %v1331
        %1433 = vmatprep.subr.mxu0 0.0
        %1434 = vmatpush1.msra.mxu0 %v1352
        %1435 = vmatprep.subr.mxu0 0.0
        %1436 = vmatpush1.msra.mxu0 0.0
        %1437 = vmatprep.subr.mxu0 0.0
        %1438 = vmatpush1.msra.mxu0 0.0
        %1439 = vmatprep.subr.mxu0 0.0
        %1440 = vmatpush1.msra.mxu0 0.0
        %1441 = vmatprep.subr.mxu0 0.0
        %1442 = vmatpush1.msra.mxu0 0.0
        %1443 = vmatprep.subr.mxu0 0.0
        %1444 = vmatpush1.msra.mxu0 0.0
        %1445 = vmatprep.subr.mxu0 0.0
        %1446 = vmatpush1.msra.mxu0 0.0
        %1447 = vmatprep.subr.mxu0 0.0
        %1448 = vmatpush1.msra.mxu0 0.0
        %1449 = vmatprep.subr.mxu0 0.0
        %1450 = vmatpush1.msra.mxu0 0.0
        %1451 = vmatprep.subr.mxu0 0.0
        %1452 = vmatpush1.msra.mxu0 0.0
        %1453 = vmatprep.subr.mxu0 0.0
        %1454 = vmatpush1.msra.mxu0 0.0
        %1455 = vmatprep.subr.mxu0 0.0
        %1456 = vmatpush1.msra.mxu0 0.0
        %1457 = vmatprep.subr.mxu0 0.0
        %1458 = vmatpush1.msra.mxu0 0.0
        %1459 = vmatprep.subr.mxu0 0.0
        %1460 = vmatpush1.msra.mxu0 0.0
        %1461 = vmatprep.subr.mxu0 0.0
        %1462 = vmatpush1.msra.mxu0 0.0
        %1463 = vmatprep.subr.mxu0 0.0
        %1464 = vmatpush1.msra.mxu0 0.0
        %1465 = vmatprep.subr.mxu0 0.0
        %1466 = vmatpush1.msra.mxu0 0.0
        %1467 = vmatprep.subr.mxu0 0.0
        %1468 = vmatpush1.msra.mxu0 0.0
        %1469 = vmatprep.subr.mxu0 0.0
        %1470 = vmatpush1.msra.mxu0 0.0
        %1471 = vmatprep.subr.mxu0 0.0
        %1472 = vmatpush1.msra.mxu0 0.0
        %1473 = vmatprep.subr.mxu0 0.0
        %1474 = vmatpush1.msra.mxu0 0.0
        %1475 = vmatprep.subr.mxu0 0.0
        %1476 = vmatpush1.msra.mxu0 0.0
        %1477 = vmatprep.subr.mxu0 0.0
        %1478 = vmatpush1.msra.mxu0 0.0
        %1479 = vmatprep.subr.mxu0 0.0
        %1480 = vmatpush1.msra.mxu0 0.0
        %1481 = vmatprep.subr.mxu0 0.0
        %1482 = vmatpush1.msra.mxu0 0.0
        %1483 = vmatprep.subr.mxu0 0.0
        %1484 = vmatpush1.msra.mxu0 0.0
        %1485 = vmatprep.subr.mxu0 0.0
        %1486 = vmatpush1.msra.mxu0 0.0
        %1487 = vmatprep.subr.mxu0 0.0
        %1488 = vmatpush1.msra.mxu0 0.0
        %1489 = vmatprep.mubr.f32.mxu0 0.0
        %1490 = vmatmul.mubr.f32.gmra.mrb[0].mxu0 %v1342
        %v1491 = vpop.f32.mrb[0].mxu0
        %v1492 = vadd.f32 %v1338, %v1491
        %v1493 = vpop.f32.mrb[0].mxu0
        %1494 = vdwg.mxu0
        %v1495 = vmax.f32 %v1421, 0.0
        %v1496 = vmax.f32 %v1423, 0.0
        %v1497 = vmax.f32 %v1492, 0.0
        %v1498 = vand.u32 2147483647, %v1421
        %v1499 = vand.u32 2147483647, %v1423
        %v1500 = vand.u32 2147483647, %v1492
        %v1501 = vsub.f32 0.0, %v1498
        %v1502 = vsub.f32 0.0, %v1499
        %v1503 = vsub.f32 0.0, %v1500
        %v1504 = vmul.f32 %v1501, 1.442695
        %v1505 = vpow.pop %v1504
        %v1506 = vmul.f32 %v1502, 1.442695
        %v1507 = vpow.pop %v1506
        %v1508 = vmul.f32 %v1503, 1.442695
        %v1509 = vpow.pop %v1508
        %v1510 = vadd.f32 %v1505, 1.0
        %v1511 = vlog2.pop %v1510
        %v1512 = vmul.f32 %v1511, 0.6931472
        %v1513 = vmul.f32 -0.5, %v1505
        %v1514 = vadd.f32 %v1513, 1.0
        %v1515 = vmul.f32 %v1514, %v1505
        %v1516 = vand.u32 2147483647, %v1505
        %vm1517 = vcmp.lt.f32.partialorder %v1516, 0.0004427343
        %v1518 = vsel %vm1517, %v1515, %v1512
        %v1519 = vadd.f32 %v1507, 1.0
        %v1520 = vlog2.pop %v1519
        %v1521 = vmul.f32 %v1520, 0.6931472
        %v1522 = vmul.f32 -0.5, %v1507
        %v1523 = vadd.f32 %v1522, 1.0
        %v1524 = vmul.f32 %v1523, %v1507
        %v1525 = vand.u32 2147483647, %v1507
        %vm1526 = vcmp.lt.f32.partialorder %v1525, 0.0004427343
        %v1527 = vsel %vm1526, %v1524, %v1521
        %v1528 = vadd.f32 %v1509, 1.0
        %v1529 = vlog2.pop %v1528
        %v1530 = vmul.f32 %v1529, 0.6931472
        %v1531 = vmul.f32 -0.5, %v1509
        %v1532 = vadd.f32 %v1531, 1.0
        %v1533 = vmul.f32 %v1532, %v1509
        %v1534 = vand.u32 2147483647, %v1509
        %vm1535 = vcmp.lt.f32.partialorder %v1534, 0.0004427343
        %v1536 = vsel %vm1535, %v1533, %v1530
        %v1537 = vadd.f32 %v1495, %v1518
        %v1538 = vadd.f32 %v1496, %v1527
        %v1539 = vadd.f32 %v1497, %v1536
        %v1540 = vtanh.pop %v1537
        %v1541 = vtanh.pop %v1538
        %v1542 = vtanh.pop %v1539
        %v1543 = vmul.f32 %v1421, %v1540
        %v1544 = vmul.f32 %v1423, %v1541
        %v1545 = vmul.f32 %v1492, %v1542
        %v1546 = vld [vmem:[%s7] sm:$0xff]
        %v1547 = vld [vmem:[%s8] sm:$0xff]
        %1549 = vset.pattern.permute.xlu0 0
        %1550 = vperm.xlu0 %1549, %v1547
        %v1551 = vpop.permute.xlu0 %1550
        %vm1553 = vcmask 31744
        %v1555 = vsel %vm1553, %v1546, 0
        %v1558 = vsel %vm1344, %v1543, 0
        %v1561 = vsel %vm1344, %v1544, 0
        %v1564 = vsel %vm1344, %v1545, 0
        %1566 = vmatprep.subr.mxu0 %v1561
        %1567 = vmatpush1.msra.mxu0 %v1558
        %1568 = vmatprep.subr.mxu0 0.0
        %1569 = vmatpush1.msra.mxu0 0.0
        %1570 = vmatprep.subr.mxu0 0.0
        %1571 = vmatpush1.msra.mxu0 0.0
        %1572 = vmatprep.subr.mxu0 0.0
        %1573 = vmatpush1.msra.mxu0 0.0
        %1574 = vmatprep.subr.mxu0 0.0
        %1575 = vmatpush1.msra.mxu0 0.0
        %1576 = vmatprep.subr.mxu0 0.0
        %1577 = vmatpush1.msra.mxu0 0.0
        %1578 = vmatprep.subr.mxu0 0.0
        %1579 = vmatpush1.msra.mxu0 0.0
        %1580 = vmatprep.subr.mxu0 0.0
        %1581 = vmatpush1.msra.mxu0 0.0
        %1582 = vmatprep.subr.mxu0 0.0
        %1583 = vmatpush1.msra.mxu0 0.0
        %1584 = vmatprep.subr.mxu0 0.0
        %1585 = vmatpush1.msra.mxu0 0.0
        %1586 = vmatprep.subr.mxu0 0.0
        %1587 = vmatpush1.msra.mxu0 0.0
        %1588 = vmatprep.subr.mxu0 0.0
        %1589 = vmatpush1.msra.mxu0 0.0
        %1590 = vmatprep.subr.mxu0 0.0
        %1591 = vmatpush1.msra.mxu0 0.0
        %1592 = vmatprep.subr.mxu0 0.0
        %1593 = vmatpush1.msra.mxu0 0.0
        %1594 = vmatprep.subr.mxu0 0.0
        %1595 = vmatpush1.msra.mxu0 0.0
        %1596 = vmatprep.subr.mxu0 0.0
        %1597 = vmatpush1.msra.mxu0 0.0
        %1598 = vmatprep.subr.mxu0 0.0
        %1599 = vmatpush1.msra.mxu0 0.0
        %1600 = vmatprep.subr.mxu0 0.0
        %1601 = vmatpush1.msra.mxu0 0.0
        %1602 = vmatprep.subr.mxu0 0.0
        %1603 = vmatpush1.msra.mxu0 0.0
        %1604 = vmatprep.subr.mxu0 0.0
        %1605 = vmatpush1.msra.mxu0 0.0
        %1606 = vmatprep.subr.mxu0 0.0
        %1607 = vmatpush1.msra.mxu0 0.0
        %1608 = vmatprep.subr.mxu0 0.0
        %1609 = vmatpush1.msra.mxu0 0.0
        %1610 = vmatprep.subr.mxu0 0.0
        %1611 = vmatpush1.msra.mxu0 0.0
        %1612 = vmatprep.subr.mxu0 0.0
        %1613 = vmatpush1.msra.mxu0 0.0
        %1614 = vmatprep.subr.mxu0 0.0
        %1615 = vmatpush1.msra.mxu0 0.0
        %1616 = vmatprep.subr.mxu0 0.0
        %1617 = vmatpush1.msra.mxu0 0.0
        %1618 = vmatprep.subr.mxu0 0.0
        %1619 = vmatpush1.msra.mxu0 0.0
        %1620 = vmatprep.subr.mxu0 0.0
        %1621 = vmatpush1.msra.mxu0 0.0
        %1622 = vmatprep.subr.mxu0 0.0
        %1623 = vmatpush1.msra.mxu0 0.0
        %1624 = vmatprep.subr.mxu0 0.0
        %1625 = vmatpush1.msra.mxu0 0.0
        %1626 = vmatprep.subr.mxu0 0.0
        %1627 = vmatpush1.msra.mxu0 0.0
        %1628 = vmatprep.subr.mxu0 0.0
        %1629 = vmatpush1.msra.mxu0 0.0
        %1630 = vmatprep.mubr.f32.mxu0 0.0
        %1631 = vmatmul.mubr.f32.gmra.mrb[0].mxu0 %v1555
        %v1632 = vpop.f32.mrb[0].mxu0
        %v1633 = vadd.f32 %v1551, %v1632
        %v1634 = vpop.f32.mrb[0].mxu0
        %v1635 = vadd.f32 %v1551, %v1634
        %1636 = vdwg.mxu0
        %1637 = vmatprep.subr.mxu0 0.0
        %1638 = vmatpush1.msra.mxu0 %v1564
        %1639 = vmatprep.subr.mxu0 0.0
        %1640 = vmatpush1.msra.mxu0 0.0
        %1641 = vmatprep.subr.mxu0 0.0
        %1642 = vmatpush1.msra.mxu0 0.0
        %1643 = vmatprep.subr.mxu0 0.0
        %1644 = vmatpush1.msra.mxu0 0.0
        %1645 = vmatprep.subr.mxu0 0.0
        %1646 = vmatpush1.msra.mxu0 0.0
        %1647 = vmatprep.subr.mxu0 0.0
        %1648 = vmatpush1.msra.mxu0 0.0
        %1649 = vmatprep.subr.mxu0 0.0
        %1650 = vmatpush1.msra.mxu0 0.0
        %1651 = vmatprep.subr.mxu0 0.0
        %1652 = vmatpush1.msra.mxu0 0.0
        %1653 = vmatprep.subr.mxu0 0.0
        %1654 = vmatpush1.msra.mxu0 0.0
        %1655 = vmatprep.subr.mxu0 0.0
        %1656 = vmatpush1.msra.mxu0 0.0
        %1657 = vmatprep.subr.mxu0 0.0
        %1658 = vmatpush1.msra.mxu0 0.0
        %1659 = vmatprep.subr.mxu0 0.0
        %1660 = vmatpush1.msra.mxu0 0.0
        %1661 = vmatprep.subr.mxu0 0.0
        %1662 = vmatpush1.msra.mxu0 0.0
        %1663 = vmatprep.subr.mxu0 0.0
        %1664 = vmatpush1.msra.mxu0 0.0
        %1665 = vmatprep.subr.mxu0 0.0
        %1666 = vmatpush1.msra.mxu0 0.0
        %1667 = vmatprep.subr.mxu0 0.0
        %1668 = vmatpush1.msra.mxu0 0.0
        %1669 = vmatprep.subr.mxu0 0.0
        %1670 = vmatpush1.msra.mxu0 0.0
        %1671 = vmatprep.subr.mxu0 0.0
        %1672 = vmatpush1.msra.mxu0 0.0
        %1673 = vmatprep.subr.mxu0 0.0
        %1674 = vmatpush1.msra.mxu0 0.0
        %1675 = vmatprep.subr.mxu0 0.0
        %1676 = vmatpush1.msra.mxu0 0.0
        %1677 = vmatprep.subr.mxu0 0.0
        %1678 = vmatpush1.msra.mxu0 0.0
        %1679 = vmatprep.subr.mxu0 0.0
        %1680 = vmatpush1.msra.mxu0 0.0
        %1681 = vmatprep.subr.mxu0 0.0
        %1682 = vmatpush1.msra.mxu0 0.0
        %1683 = vmatprep.subr.mxu0 0.0
        %1684 = vmatpush1.msra.mxu0 0.0
        %1685 = vmatprep.subr.mxu0 0.0
        %1686 = vmatpush1.msra.mxu0 0.0
        %1687 = vmatprep.subr.mxu0 0.0
        %1688 = vmatpush1.msra.mxu0 0.0
        %1689 = vmatprep.subr.mxu0 0.0
        %1690 = vmatpush1.msra.mxu0 0.0
        %1691 = vmatprep.subr.mxu0 0.0
        %1692 = vmatpush1.msra.mxu0 0.0
        %1693 = vmatprep.subr.mxu0 0.0
        %1694 = vmatpush1.msra.mxu0 0.0
        %1695 = vmatprep.subr.mxu0 0.0
        %1696 = vmatpush1.msra.mxu0 0.0
        %1697 = vmatprep.subr.mxu0 0.0
        %1698 = vmatpush1.msra.mxu0 0.0
        %1699 = vmatprep.subr.mxu0 0.0
        %1700 = vmatpush1.msra.mxu0 0.0
        %1701 = vmatprep.mubr.f32.mxu0 0.0
        %1702 = vmatmul.mubr.f32.gmra.mrb[0].mxu0 %v1555
        %v1703 = vpop.f32.mrb[0].mxu0
        %v1704 = vadd.f32 %v1551, %v1703
        %v1705 = vpop.f32.mrb[0].mxu0
        %1706 = vdwg.mxu0
        %1707 = vst [vmem:[%s380] sm:$0xff] %v1633
        %1708 = vst [vmem:[%s380 + $0x8] sm:$0xff] %v1635
        %1709 = vst [vmem:[%s380 + $0x10] sm:$0xff] %v1704
        %s1710 = sand.u32 %s253, 1
        %s1711 = scalar_lea.sflag [#allocation6], %s1710
        %s1712 = sand.u32 %s253, 1
        %s1713 = smul.addr %s1712, 24
        %s1714 = scalar_lea.vmem [#allocation7], %s1713
        // Predicated region
        $region65: #{tpu_custom_call.1} parent=59 // pred_check
          %p1715 = pneg %p263
        $region66: #{tpu_custom_call.1} parent=59 // pred_check_branch
          %1717 = sbr.rel (%p1715) target = $region68
        $region67: #{tpu_custom_call.1} parent=59 // pred_region
          %s1719 = ssub.s32 384, 384
          %1720 = vsyncadd %s1711, %s1719
          %s1721 = smul.addr %s25, 3
          %s1722 = smul.addr %s1721, 128
          %s1723 = scalar_lea.hbm %s10, %s1722
          %s1725 = sshll.u32 %s1714, 4
          %s1726 = int_to_ptr.vmem [resolvable:$true] %s1725
          %1728 = dma.vmem_to_hbm [thread:$0]  %s1726, 384, %s1723, %s1711
        $region68: #{tpu_custom_call.1} parent=59 // pred_fallthru
          _
      $region60: #{tpu_custom_call.1} parent=5 // pred_fallthru
        _
      %p1729 = scmp.le.s32.totalorder 2, %s20
      // Predicated region
      $region69: #{tpu_custom_call.1} parent=5 // pred_check
        %p1730 = pneg %p1729
      $region70: #{tpu_custom_call.1} parent=5 // pred_check_branch
        %1732 = sbr.rel (%p1730) target = $region72
      $region71: #{tpu_custom_call.1} parent=5 // pred_region
        %s1733 = ssub.s32 %s20, 2
        // Predicated region
        $region73: #{tpu_custom_call.1} parent=71 // pred_check
          %p1734 = pneg %p269
        $region74: #{tpu_custom_call.1} parent=71 // pred_check_branch
          %1736 = sbr.rel (%p1734) target = $region76
        $region75: #{tpu_custom_call.1} parent=71 // pred_region
          %s1737 = sand.u32 %s254, 1
          %s1738 = scalar_lea.sflag [#allocation6], %s1737
          %s1739 = sand.u32 %s254, 1
          %s1740 = smul.addr %s1739, 24
          %s1741 = scalar_lea.vmem [#allocation7], %s1740
          %1742 = dma.done %s1738, 384
        $region76: #{tpu_custom_call.1} parent=71 // pred_fallthru
          _
      $region72: #{tpu_custom_call.1} parent=5 // pred_fallthru
        _
    $region6: #{tpu_custom_call.1} parent=1 // loop_footer
      %s24 = sadd.s32 1, %s20
    $region7: #{tpu_custom_call.1} parent=1 // loop_footer_branch
      %19 = sbr.rel target = $region3
    $region8: #{tpu_custom_call.1} parent=1 // loop_exit
      _
    %1743 = vsyncpa [#allocation5], 1
    %s1744 = scalar_lea.sflag [#allocation5], 1
    %1745 = vsyncpa %s1744, 1
    %1746 = vsyncpa [#allocation6], 1
    %s1747 = scalar_lea.sflag [#allocation6], 1
    %1748 = vsyncpa %s1747, 1

</llo_original>
